<compile_context>
chip_gen: v7x
topology: tpu7x:2x2x1
jax: 0.10.0
libtpu: 0.0.40
codegen_flags: <defaults>
</compile_context>

<pallas_src>
import functools

import jax
import jax.numpy as jnp
from jax.experimental import pallas as pl
from jax.experimental.pallas import tpu as pltpu

BN_EPS = 1e-4
BN_INV = 1.0 / (1.0 + BN_EPS) ** 0.5  # gamma=1, beta=0, running mean=0, var=1


def _round_up(x, m):
    return ((x + m - 1) // m) * m


# ---------------------------------------------------------------------------
# Fused per-voxel heads kernel.  All BN scales are folded into the packed
# weights, so the body is: relu -> dot -> +b -> relu -> dot -> +b.
#   x   = relu(feats)                    (output_layer; its BN folded into Wcat)
#   h   = relu(x @ Wcat + bcat)          (Linear1 of both heads; head BNs folded into W2cat)
#   out = h @ W2cat + b2cat              (Linear2 of both heads, block-diag, 32-lane packed)
# ---------------------------------------------------------------------------
def heads_kernel(feats_ref, wcat_ref, bcat_ref, w2cat_ref, b2cat_ref, out_ref):
    # relu in f32 (v5e VPU has no bf16 path), back to bf16 for the MXU bf16 path
    x = jnp.maximum(feats_ref[...].astype(jnp.float32), 0.0).astype(jnp.bfloat16)
    h = jnp.dot(x, wcat_ref[...], preferred_element_type=jnp.float32) + bcat_ref[...]
    h = jnp.maximum(h, 0.0).astype(jnp.bfloat16)
    out = jnp.dot(h, w2cat_ref[...], preferred_element_type=jnp.float32) + b2cat_ref[...]
    out_ref[...] = out.astype(out_ref.dtype)


def fused_heads(feats, wcat, bcat, w2cat, b2cat, *, tile_n=8192):
    n, media = feats.shape
    two_media = wcat.shape[1]
    out_w = w2cat.shape[1]

    # Cap the tile so the block never exceeds the (row-rounded) array and so the
    # parallel grid keeps >= 2 steps when possible (shards across v7x's 2 TCs).
    tile = max(16, min(tile_n, _round_up(pl.cdiv(n, 2), 16)))
    grid = pl.cdiv(n, tile)  # no jnp.pad / tail slice: Pallas masks the partial last block

    const = lambda i: (0, 0)  # weights stay resident in VMEM across grid steps
    return pl.pallas_call(
        heads_kernel,
        out_shape=jax.ShapeDtypeStruct((n, out_w), jnp.float32),
        grid_spec=pltpu.PrefetchScalarGridSpec(
            num_scalar_prefetch=0,
            grid=(grid,),
            in_specs=[
                pl.BlockSpec((tile, media), lambda i: (i, 0)),   # voxel feats tile (bf16)
                pl.BlockSpec((media, two_media), const),         # Wcat  = BN_INV*[W1 | Wo1] (bf16)
                pl.BlockSpec((1, two_media), const),             # bcat  = [b1 | bo1]        (f32)
                pl.BlockSpec((two_media, out_w), const),         # W2cat (block-diag, BN folded, bf16)
                pl.BlockSpec((1, out_w), const),                 # b2cat                     (f32)
            ],
            out_specs=pl.BlockSpec((tile, out_w), lambda i: (i, 0)),
        ),
        compiler_params=pltpu.CompilerParams(
            dimension_semantics=("parallel",)),
    )(feats, wcat, bcat, w2cat, b2cat)


@functools.partial(jax.jit, static_argnames=("classes", "tile_n"))
def semantic_forward(voxel_feats, input_map, wcat, bcat, w2cat, b2cat,
                     *, classes, tile_n):
    # Heads are purely row-wise, so they commute with the points<-voxels gather:
    # compute per VOXEL (V rows), then gather the narrow packed output per point.
    # TODO(synk): in production the sparse backbone should emit bf16 features
    #             directly; this cast stands in for that.
    feats_v = voxel_feats.astype(jnp.bfloat16)
    packed_v = fused_heads(feats_v, wcat, bcat, w2cat, b2cat, tile_n=tile_n)  # (V, 32) f32
    # TODO(synk): gather stays in XLA; the packed row is only 128 B so jnp.take
    #             is already near HBM roofline for this step.
    packed_p = jnp.take(packed_v, input_map, axis=0)                          # (N, 32)
    # TODO(synk): downstream consumers could take the packed slab directly and
    #             skip these two small slice copies.
    sem = packed_p[:, :classes]
    off = packed_p[:, classes:classes + 3]
    return sem, off


# ---------------------------------------------------------------------------
# SSTNet-like wrapper (semantic-only forward path)
# ---------------------------------------------------------------------------
class SSTNetPallas:
    def __init__(self, classes=20, media=32, seed=0, tile_n=8192):
        self.classes = classes
        self.media = media
        self.tile_n = tile_n
        key = jax.random.PRNGKey(seed)
        ks = jax.random.split(key, 8)
        s = 0.1
        # self.linear = [Linear(media, media), BN, ReLU, Linear(media, classes)]
        w1 = s * jax.random.normal(ks[0], (media, media), jnp.float32)
        b1 = s * jax.random.normal(ks[1], (1, media), jnp.float32)
        w2 = s * jax.random.normal(ks[2], (media, classes), jnp.float32)
        b2 = s * jax.random.normal(ks[3], (1, classes), jnp.float32)
        # self.offset = [Linear(media, media), BN, ReLU]; self.offset_linear = Linear(media, 3)
        wo1 = s * jax.random.normal(ks[4], (media, media), jnp.float32)
        bo1 = s * jax.random.normal(ks[5], (1, media), jnp.float32)
        wo2 = s * jax.random.normal(ks[6], (media, 3), jnp.float32)
        bo2 = s * jax.random.normal(ks[7], (1, 3), jnp.float32)
        self.params = (w1, b1, w2, b2, wo1, bo1, wo2, bo2)

        # --- pack weights once; BN scales folded in (relu(c*x) = c*relu(x), c>0) ---
        out_pad = max(32, _round_up(classes + 3, 32))      # 23 -> 32 narrow lane-packed output
        wcat = BN_INV * jnp.concatenate([w1, wo1], axis=1)  # output_layer BN folded in
        bcat = jnp.concatenate([b1, bo1], axis=1)           # (1, 2*media)
        w2cat = jnp.zeros((2 * media, out_pad), jnp.float32)
        w2cat = w2cat.at[:media, :classes].set(BN_INV * w2)             # head BNs folded in
        w2cat = w2cat.at[media:, classes:classes + 3].set(BN_INV * wo2)
        b2cat = jnp.zeros((1, out_pad), jnp.float32)
        b2cat = b2cat.at[:, :classes].set(b2)
        b2cat = b2cat.at[:, classes:classes + 3].set(bo2)
        # bf16 weight streaming (MXU-native); f32 biases added post-accumulation.
        self.packed = (wcat.astype(jnp.bfloat16), bcat,
                       w2cat.astype(jnp.bfloat16), b2cat)

    def forward(self, voxel_feats, input_map, coords, epoch,
                fusion_epochs=10**9, score_epochs=10**9):
        ret = {}
        # TODO(synk): spconv SubMConv3d + g3n.UBlock backbone not translated;
        #             voxel_feats stands in for unet(input_conv(input)).features
        sem, off = semantic_forward(voxel_feats, input_map, *self.packed,
                                    classes=self.classes, tile_n=self.tile_n)
        ret["semantic_scores"] = sem
        ret["pt_offsets"] = off
        ret["empty_flag"] = False
        # fusion_flag / prepare_flag branches are False for epoch <= *_epochs
        # TODO(synk): hierarchical_fusion_step / clusters_voxelization / score_unet not translated
        return ret


# ---------------------------------------------------------------------------
# Pure-JAX f32 reference (un-packed params, explicit BN, point-major like PyTorch)
# ---------------------------------------------------------------------------
def reference_forward(voxel_feats, input_map, params):
    w1, b1, w2, b2, wo1, bo1, wo2, bo2 = params
    ov = jnp.maximum(voxel_feats * BN_INV, 0.0)          # output_layer BN + ReLU
    f = ov[input_map]                                    # features[input_map]
    h = jnp.maximum((f @ w1 + b1) * BN_INV, 0.0)
    sem = h @ w2 + b2
    g = jnp.maximum((f @ wo1 + bo1) * BN_INV, 0.0)
    off = g @ wo2 + bo2
    return sem, off


if __name__ == "__main__":
    N = 2048      # number of points
    V = 944       # number of voxels (not a tile multiple -> exercises masked partial block)
    media = 32
    classes = 20

    key = jax.random.PRNGKey(0)
    k_vox, k_map, k_crd = jax.random.split(key, 3)
    voxel_feats = jax.random.normal(k_vox, (V, media), jnp.float32)
    input_map = jax.random.randint(k_map, (N,), 0, V, jnp.int32)
    coords = jax.random.normal(k_crd, (N, 3), jnp.float32)

    net = SSTNetPallas(classes=classes, media=media, seed=0)
    ret = net.forward(voxel_feats, input_map, coords, epoch=1)
    sem = jax.block_until_ready(ret["semantic_scores"])
    off = jax.block_until_ready(ret["pt_offsets"])

    sem_ref, off_ref = reference_forward(voxel_feats, input_map, net.params)
    assert sem.shape == (N, classes) and off.shape == (N, 3)
    # bf16 feature/weight streaming with f32 accumulation vs f32 reference: ~1e-3..1e-2 agreement
    assert jnp.allclose(sem, sem_ref, rtol=2e-2, atol=2e-2), float(jnp.max(jnp.abs(sem - sem_ref)))
    assert jnp.allclose(off, off_ref, rtol=2e-2, atol=2e-2), float(jnp.max(jnp.abs(off - off_ref)))

    print("KERNEL_OK")
</pallas_src>

<mosaic_0001>
module attributes {stable_mosaic.version = 11 : i64} {
  func.func @heads_kernel(%arg0: i32, %arg1: memref<480x32xbf16, #tpu.memory_space<vmem>>, %arg2: memref<32x64xbf16, #tpu.memory_space<vmem>>, %arg3: memref<1x64xf32, #tpu.memory_space<vmem>>, %arg4: memref<64x32xbf16, #tpu.memory_space<vmem>>, %arg5: memref<1x32xf32, #tpu.memory_space<vmem>>, %arg6: memref<480x32xf32, #tpu.memory_space<vmem>>) attributes {dimension_semantics = [#tpu.dimension_semantics<parallel>], iteration_bounds = array<i64: 2>, scalar_prefetch = 0 : i64, scratch_operands = 0 : i64, tpu.core_type = #tpu.core_type<tc>, window_params = [{transform_indices = @transform_0, window_bounds = array<i64: 480, 32>}, {pipeline_mode = #tpu.pipeline_mode<synchronous>, transform_indices = @transform_1, window_bounds = array<i64: 32, 64>}, {pipeline_mode = #tpu.pipeline_mode<synchronous>, transform_indices = @transform_2, window_bounds = array<i64: 1, 64>}, {pipeline_mode = #tpu.pipeline_mode<synchronous>, transform_indices = @transform_3, window_bounds = array<i64: 64, 32>}, {pipeline_mode = #tpu.pipeline_mode<synchronous>, transform_indices = @transform_4, window_bounds = array<i64: 1, 32>}, {transform_indices = @transform_5, window_bounds = array<i64: 480, 32>}]} {
    %c0 = arith.constant 0 : index
    %c0_0 = arith.constant 0 : index
    %0 = vector.load %arg1[%c0, %c0_0] : memref<480x32xbf16, #tpu.memory_space<vmem>>, vector<480x32xbf16>
    %1 = arith.extf %0 : vector<480x32xbf16> to vector<480x32xf32>
    %cst = arith.constant 0.000000e+00 : f32
    %2 = vector.broadcast %cst : f32 to vector<480x32xf32>
    %3 = arith.maximumf %1, %2 : vector<480x32xf32>
    %4 = arith.truncf %3 : vector<480x32xf32> to vector<480x32xbf16>
    %c0_1 = arith.constant 0 : index
    %c0_2 = arith.constant 0 : index
    %5 = vector.load %arg2[%c0_1, %c0_2] : memref<32x64xbf16, #tpu.memory_space<vmem>>, vector<32x64xbf16>
    %cst_3 = arith.constant dense<0.000000e+00> : vector<480x64xf32>
    %6 = tpu.matmul %4, %5, %cst_3 {dimension_numbers = #tpu.dot_dimension_numbers<[1], [0], [0], [1], [0, 0, 1, 1], [], []>} : vector<480x32xbf16>, vector<32x64xbf16>, vector<480x64xf32> -> vector<480x64xf32>
    %c0_4 = arith.constant 0 : index
    %c0_5 = arith.constant 0 : index
    %7 = vector.load %arg3[%c0_4, %c0_5] : memref<1x64xf32, #tpu.memory_space<vmem>>, vector<1x64xf32>
    %8 = vector.broadcast %7 : vector<1x64xf32> to vector<480x64xf32>
    %9 = arith.addf %6, %8 : vector<480x64xf32>
    %cst_6 = arith.constant 0.000000e+00 : f32
    %10 = vector.broadcast %cst_6 : f32 to vector<480x64xf32>
    %11 = arith.maximumf %9, %10 : vector<480x64xf32>
    %12 = arith.truncf %11 : vector<480x64xf32> to vector<480x64xbf16>
    %c0_7 = arith.constant 0 : index
    %c0_8 = arith.constant 0 : index
    %13 = vector.load %arg4[%c0_7, %c0_8] : memref<64x32xbf16, #tpu.memory_space<vmem>>, vector<64x32xbf16>
    %cst_9 = arith.constant dense<0.000000e+00> : vector<480x32xf32>
    %14 = tpu.matmul %12, %13, %cst_9 {dimension_numbers = #tpu.dot_dimension_numbers<[1], [0], [0], [1], [0, 0, 1, 1], [], []>} : vector<480x64xbf16>, vector<64x32xbf16>, vector<480x32xf32> -> vector<480x32xf32>
    %c0_10 = arith.constant 0 : index
    %c0_11 = arith.constant 0 : index
    %15 = vector.load %arg5[%c0_10, %c0_11] : memref<1x32xf32, #tpu.memory_space<vmem>>, vector<1x32xf32>
    %16 = vector.broadcast %15 : vector<1x32xf32> to vector<480x32xf32>
    %17 = arith.addf %14, %16 : vector<480x32xf32>
    %c0_12 = arith.constant 0 : index
    %c0_13 = arith.constant 0 : index
    %18 = vector.load %arg6[%c0_12, %c0_13] : memref<480x32xf32, #tpu.memory_space<vmem>>, vector<480x32xf32>
    tpu.vector_store %arg6[%c0_12, %c0_13], %17 {strides = array<i32>} : memref<480x32xf32, #tpu.memory_space<vmem>>, vector<480x32xf32>,
    return
  }
  func.func @transform_0(%arg0: i32) -> (i32, i32) {
    %c0_i32 = arith.constant 0 : i32
    %c0_i32_0 = arith.constant 0 : i32
    return %arg0, %c0_i32 : i32, i32
  }
  func.func @transform_1(%arg0: i32) -> (i32, i32) {
    %c0_i32 = arith.constant 0 : i32
    %c0_i32_0 = arith.constant 0 : i32
    %c0_i32_1 = arith.constant 0 : i32
    return %c0_i32, %c0_i32_0 : i32, i32
  }
  func.func @transform_2(%arg0: i32) -> (i32, i32) {
    %c0_i32 = arith.constant 0 : i32
    %c0_i32_0 = arith.constant 0 : i32
    %c0_i32_1 = arith.constant 0 : i32
    return %c0_i32, %c0_i32_0 : i32, i32
  }
  func.func @transform_3(%arg0: i32) -> (i32, i32) {
    %c0_i32 = arith.constant 0 : i32
    %c0_i32_0 = arith.constant 0 : i32
    %c0_i32_1 = arith.constant 0 : i32
    return %c0_i32, %c0_i32_0 : i32, i32
  }
  func.func @transform_4(%arg0: i32) -> (i32, i32) {
    %c0_i32 = arith.constant 0 : i32
    %c0_i32_0 = arith.constant 0 : i32
    %c0_i32_1 = arith.constant 0 : i32
    return %c0_i32, %c0_i32_0 : i32, i32
  }
  func.func @transform_5(%arg0: i32) -> (i32, i32) {
    %c0_i32 = arith.constant 0 : i32
    %c0_i32_0 = arith.constant 0 : i32
    return %arg0, %c0_i32 : i32, i32
  }
}

</mosaic_0001>

<llo_original>
// kernel: semantic_forward.1
$region0: #{semantic_forward.1}
  #allocation0 [shape = 'u32[]', space=smem, size = 0x4, offset = 0x4, fixed_abs, tag = 'smem constant byte address 0x4 - core index']
  #allocation1 [shape = 'u32[144,128]{1,0:T(1,128)}', space=vmem, size = 0x12000, scoped, tag = 'internal scratch']
  %s0 = inlined_call_operand.vmem [shape: bf16[944,32], index: 0, kind: input, shape index: {}]
  %s1 = inlined_call_operand.vmem [shape: bf16[32,64], index: 1, kind: input, shape index: {}]
  %s2 = inlined_call_operand.vmem [shape: f32[1,64], index: 2, kind: input, shape index: {}]
  %s3 = inlined_call_operand.vmem [shape: bf16[64,32], index: 3, kind: input, shape index: {}]
  %s4 = inlined_call_operand.vmem [shape: f32[1,32], index: 4, kind: input, shape index: {}]
  %s5 = inlined_call_operand.vmem [shape: f32[944,32], index: 5, kind: output, shape index: {}]
  %s6 = sld [smem:[#allocation0]]
  $region101: #{semantic_forward.1} parent=0
    _
  %s8 = ssub.s32 1, %s6
  %s9 = scalar_select 0, %s8, %s6
  $region1: #{semantic_forward.1} parent=0
    #allocation2 [shape = 'u8[491520]{0}', space=vmem, size = 0x78000, scoped, tag = 'output window, operand 0']
    loop: start=0, step=1, limit=4
    $region2: #{semantic_forward.1} parent=1 // loop_pre_header
      _
    $region3: #{semantic_forward.1} parent=1 // loop_header
      %s11 = sphi 0, %s15
      %p12 = scmp.ge.s32.totalorder %s11, 4
      %s21 = sphi 0, %s23
      %s24 = sphi 0, %s21
      %s25 = sphi 0, %s24
      %s41 = sphi 0, %s25
      %s45 = sphi 0, %s45
      %s47 = sphi 0, %s45
      %s48 = sphi 0, %s47
      %s62 = sphi 0, %s48
      %s66 = sphi 0, %s66
      %s68 = sphi 0, %s66
      %s69 = sphi 0, %s68
      %s83 = sphi 0, %s69
      %s87 = sphi 0, %s87
      %s89 = sphi 0, %s87
      %s90 = sphi 0, %s89
      %s104 = sphi 0, %s90
      %s108 = sphi 0, %s108
      %s110 = sphi 0, %s108
      %s111 = sphi 0, %s110
      %s125 = sphi 0, %s111
      %s131 = sphi 0, %s133
      %s134 = sphi 0, %s131
      %s135 = sphi 0, %s134
      %s151 = sphi 0, %s135
    $region4: #{semantic_forward.1} parent=1 // loop_header_branch
      %14 = sbr.rel (%p12) target = $region8
    $region5: #{semantic_forward.1} parent=1 // loop_body
      %s16 = ssub.s32 %s11, 1
      %s17 = ssub.s32 %s11, 2
      %s18 = sadd.s32 %s11, 1
      %s19 = ssub.s32 %s11, %s18
      %p20 = scmp.eq.s32.totalorder %s19, 0
      %s22 = sadd.s32 %s21, 1
      %s23 = scalar_select %p20, %s21, %s22
      %p26 = pneg %p20
      %p27 = scmp.eq.s32.totalorder %s11, 1
      %p28 = por %p26, %p27
      %p29 = scmp.ne.s32.totalorder %s21, %s24
      %p30 = scmp.eq.s32.totalorder %s11, 0
      %p31 = por %p29, %p30
      %p32 = scmp.ne.s32.totalorder %s21, %s24
      %p33 = scmp.eq.s32.totalorder %s16, 1
      %p34 = por %p32, %p33
      %p35 = scmp.ne.s32.totalorder %s24, %s25
      %p36 = scmp.eq.s32.totalorder %s16, 0
      %p37 = por %p35, %p36
      %p38 = scmp.ne.s32.totalorder %s24, %s25
      %p39 = scmp.eq.s32.totalorder %s17, 1
      %p40 = por %p38, %p39
      %p42 = scmp.ne.s32.totalorder %s25, %s41
      %p43 = scmp.eq.s32.totalorder %s17, 0
      %p44 = por %p42, %p43
      %s46 = sadd.s32 %s45, 1
      %p49 = scmp.eq.s32.totalorder %s11, 1
      %p50 = scmp.ne.s32.totalorder %s45, %s47
      %p51 = scmp.eq.s32.totalorder %s11, 0
      %p52 = por %p50, %p51
      %p53 = scmp.ne.s32.totalorder %s45, %s47
      %p54 = scmp.eq.s32.totalorder %s16, 1
      %p55 = por %p53, %p54
      %p56 = scmp.ne.s32.totalorder %s47, %s48
      %p57 = scmp.eq.s32.totalorder %s16, 0
      %p58 = por %p56, %p57
      %p59 = scmp.ne.s32.totalorder %s47, %s48
      %p60 = scmp.eq.s32.totalorder %s17, 1
      %p61 = por %p59, %p60
      %p63 = scmp.ne.s32.totalorder %s48, %s62
      %p64 = scmp.eq.s32.totalorder %s17, 0
      %p65 = por %p63, %p64
      %s67 = sadd.s32 %s66, 1
      %p70 = scmp.eq.s32.totalorder %s11, 1
      %p71 = scmp.ne.s32.totalorder %s66, %s68
      %p72 = scmp.eq.s32.totalorder %s11, 0
      %p73 = por %p71, %p72
      %p74 = scmp.ne.s32.totalorder %s66, %s68
      %p75 = scmp.eq.s32.totalorder %s16, 1
      %p76 = por %p74, %p75
      %p77 = scmp.ne.s32.totalorder %s68, %s69
      %p78 = scmp.eq.s32.totalorder %s16, 0
      %p79 = por %p77, %p78
      %p80 = scmp.ne.s32.totalorder %s68, %s69
      %p81 = scmp.eq.s32.totalorder %s17, 1
      %p82 = por %p80, %p81
      %p84 = scmp.ne.s32.totalorder %s69, %s83
      %p85 = scmp.eq.s32.totalorder %s17, 0
      %p86 = por %p84, %p85
      %s88 = sadd.s32 %s87, 1
      %p91 = scmp.eq.s32.totalorder %s11, 1
      %p92 = scmp.ne.s32.totalorder %s87, %s89
      %p93 = scmp.eq.s32.totalorder %s11, 0
      %p94 = por %p92, %p93
      %p95 = scmp.ne.s32.totalorder %s87, %s89
      %p96 = scmp.eq.s32.totalorder %s16, 1
      %p97 = por %p95, %p96
      %p98 = scmp.ne.s32.totalorder %s89, %s90
      %p99 = scmp.eq.s32.totalorder %s16, 0
      %p100 = por %p98, %p99
      %p101 = scmp.ne.s32.totalorder %s89, %s90
      %p102 = scmp.eq.s32.totalorder %s17, 1
      %p103 = por %p101, %p102
      %p105 = scmp.ne.s32.totalorder %s90, %s104
      %p106 = scmp.eq.s32.totalorder %s17, 0
      %p107 = por %p105, %p106
      %s109 = sadd.s32 %s108, 1
      %p112 = scmp.eq.s32.totalorder %s11, 1
      %p113 = scmp.ne.s32.totalorder %s108, %s110
      %p114 = scmp.eq.s32.totalorder %s11, 0
      %p115 = por %p113, %p114
      %p116 = scmp.ne.s32.totalorder %s108, %s110
      %p117 = scmp.eq.s32.totalorder %s16, 1
      %p118 = por %p116, %p117
      %p119 = scmp.ne.s32.totalorder %s110, %s111
      %p120 = scmp.eq.s32.totalorder %s16, 0
      %p121 = por %p119, %p120
      %p122 = scmp.ne.s32.totalorder %s110, %s111
      %p123 = scmp.eq.s32.totalorder %s17, 1
      %p124 = por %p122, %p123
      %p126 = scmp.ne.s32.totalorder %s111, %s125
      %p127 = scmp.eq.s32.totalorder %s17, 0
      %p128 = por %p126, %p127
      %s129 = ssub.s32 %s11, %s18
      %p130 = scmp.eq.s32.totalorder %s129, 0
      %s132 = sadd.s32 %s131, 1
      %s133 = scalar_select %p130, %s131, %s132
      %p136 = pneg %p130
      %p137 = scmp.eq.s32.totalorder %s11, 1
      %p138 = por %p136, %p137
      %p139 = scmp.ne.s32.totalorder %s131, %s134
      %p140 = scmp.eq.s32.totalorder %s11, 0
      %p141 = por %p139, %p140
      %p142 = scmp.ne.s32.totalorder %s131, %s134
      %p143 = scmp.eq.s32.totalorder %s16, 1
      %p144 = por %p142, %p143
      %p145 = scmp.ne.s32.totalorder %s134, %s135
      %p146 = scmp.eq.s32.totalorder %s16, 0
      %p147 = por %p145, %p146
      %p148 = scmp.ne.s32.totalorder %s134, %s135
      %p149 = scmp.eq.s32.totalorder %s17, 1
      %p150 = por %p148, %p149
      %p152 = scmp.ne.s32.totalorder %s135, %s151
      %p153 = scmp.eq.s32.totalorder %s17, 0
      %p154 = por %p152, %p153
      %p155 = scmp.le.s32.totalorder 1, %s11
      %p156 = scmp.lt.s32.totalorder %s11, 3
      %p157 = pnand %p155, %p156
      %p158 = pneg %p157
      // Predicated region
      $region9: #{semantic_forward.1} parent=5 // pred_check
        _
      $region10: #{semantic_forward.1} parent=5 // pred_check_branch
        %160 = sbr.rel (%p157) target = $region12
      $region11: #{semantic_forward.1} parent=5 // pred_region
        %s161 = ssub.s32 %s11, 1
        // Predicated region
        $region13: #{semantic_forward.1} parent=11 // pred_check
          %p162 = pneg %p58
        $region14: #{semantic_forward.1} parent=11 // pred_check_branch
          %164 = sbr.rel (%p162) target = $region16
        $region15: #{semantic_forward.1} parent=11 // pred_region
          _
        $region16: #{semantic_forward.1} parent=11 // pred_fallthru
          _
        // Predicated region
        $region17: #{semantic_forward.1} parent=11 // pred_check
          %p165 = pneg %p79
        $region18: #{semantic_forward.1} parent=11 // pred_check_branch
          %167 = sbr.rel (%p165) target = $region20
        $region19: #{semantic_forward.1} parent=11 // pred_region
          _
        $region20: #{semantic_forward.1} parent=11 // pred_fallthru
          _
        // Predicated region
        $region21: #{semantic_forward.1} parent=11 // pred_check
          %p168 = pneg %p100
        $region22: #{semantic_forward.1} parent=11 // pred_check_branch
          %170 = sbr.rel (%p168) target = $region24
        $region23: #{semantic_forward.1} parent=11 // pred_region
          _
        $region24: #{semantic_forward.1} parent=11 // pred_fallthru
          _
        // Predicated region
        $region25: #{semantic_forward.1} parent=11 // pred_check
          %p171 = pneg %p121
        $region26: #{semantic_forward.1} parent=11 // pred_check_branch
          %173 = sbr.rel (%p171) target = $region28
        $region27: #{semantic_forward.1} parent=11 // pred_region
          _
        $region28: #{semantic_forward.1} parent=11 // pred_fallthru
          _
      $region12: #{semantic_forward.1} parent=5 // pred_fallthru
        _
      %p174 = scmp.lt.s32.totalorder %s11, 2
      // Predicated region
      $region29: #{semantic_forward.1} parent=5 // pred_check
        %p175 = pneg %p174
      $region30: #{semantic_forward.1} parent=5 // pred_check_branch
        %177 = sbr.rel (%p175) target = $region32
      $region31: #{semantic_forward.1} parent=5 // pred_region
        // Predicated region
        $region33: #{semantic_forward.1} parent=31 // pred_check
          %p178 = pneg %p31
        $region34: #{semantic_forward.1} parent=31 // pred_check_branch
          %180 = sbr.rel (%p178) target = $region36
        $region35: #{semantic_forward.1} parent=31 // pred_region
          %s181 = smul.u32 60, %s11
          %s182 = ssub.s32 118, %s181
          %p183 = scmp.lt.s32.totalorder %s182, 60
          %s184 = scalar_select %p183, %s182, 60
          %s185 = smul.u32 64, %s184
          %p186 = scmp.lt.s32.totalorder %s181, 117
          %s187 = scalar_select %p186, %s181, 117
          %s188 = smul.addr %s187, 4
          %s189 = scalar_lea.vmem %s0, %s188
          %s190 = smul.u32 60, %s11
          %s191 = ssub.s32 118, %s190
          %p192 = scmp.lt.s32.totalorder %s191, 60
          %s193 = scalar_select %p192, %s191, 60
          %s194 = smul.u32 64, %s193
        $region36: #{semantic_forward.1} parent=31 // pred_fallthru
          _
      $region32: #{semantic_forward.1} parent=5 // pred_fallthru
        _
      %p195 = scmp.le.s32.totalorder 1, %s11
      %p196 = scmp.lt.s32.totalorder %s11, 3
      %p197 = pnand %p195, %p196
      %p198 = pneg %p197
      // Predicated region
      $region37: #{semantic_forward.1} parent=5 // pred_check
        _
      $region38: #{semantic_forward.1} parent=5 // pred_check_branch
        %200 = sbr.rel (%p197) target = $region40
      $region39: #{semantic_forward.1} parent=5 // pred_region
        %s201 = ssub.s32 %s11, 1
        %s202 = smul.u32 60, %s16
        %s203 = ssub.s32 118, %s202
        %p204 = scmp.lt.s32.totalorder %s203, 60
        %s205 = scalar_select %p204, %s203, 60
        %s206 = smul.u32 64, %s205
        %p207 = scmp.lt.s32.totalorder %s202, 117
        %s208 = scalar_select %p207, %s202, 117
        %s209 = smul.addr %s208, 4
        %s210 = scalar_lea.vmem %s0, %s209
        %p211 = pneg %p37
        %p212 = pneg %p34
        %p213 = pneg %p58
        %p214 = pneg %p55
        %p215 = pneg %p79
        %p216 = pneg %p76
        %p217 = pneg %p100
        %p218 = pneg %p97
        %p219 = pneg %p121
        %p220 = pneg %p118
        %p221 = pneg %p147
        %p222 = pneg %p144
        %s223 = sand.u32 %s134, 1
        %s224 = sand.u32 %s134, 1
        %s225 = smul.addr %s224, 480
        %s226 = scalar_lea.vmem [#allocation2], %s225
        %s227 = smul.u32 60, %s16
        %s228 = ssub.s32 118, %s227
        %p229 = scmp.lt.s32.totalorder %s228, 60
        %s230 = scalar_select %p229, %s228, 60
        %s231 = smul.u32 64, %s230
        %p232 = scmp.lt.s32.totalorder %s227, 117
        %s233 = scalar_select %p232, %s227, 117
        %s234 = smul.addr %s233, 4
        %s235 = scalar_lea.vmem %s0, %s234
        %s236 = smul.u32 60, %s16
        %s237 = ssub.s32 118, %s236
        %p238 = scmp.lt.s32.totalorder %s237, 60
        %s239 = scalar_select %p238, %s237, 60
        %s240 = smul.u32 64, %s239
        %s241 = smul.u32 60, %s16
        %s242 = ssub.s32 118, %s241
        %p243 = scmp.lt.s32.totalorder %s242, 60
        %s244 = scalar_select %p243, %s242, 60
        %s245 = smul.u32 128, %s244
        %v247 = vld [vmem:[%s235] sm:$0xf]
        %v248 = vld [vmem:[%s235 + $0x4] sm:$0xf]
        %v249 = vld [vmem:[%s235 + $0x8] sm:$0xf]
        %v250 = vld [vmem:[%s235 + $0xc] sm:$0xf]
        %v251 = vld [vmem:[%s235 + $0x10] sm:$0xf]
        %v252 = vld [vmem:[%s235 + $0x14] sm:$0xf]
        %v253 = vld [vmem:[%s235 + $0x18] sm:$0xf]
        %v254 = vld [vmem:[%s235 + $0x1c] sm:$0xf]
        %v255 = vld [vmem:[%s235 + $0x20] sm:$0xf]
        %v256 = vld [vmem:[%s235 + $0x24] sm:$0xf]
        %v257 = vld [vmem:[%s235 + $0x28] sm:$0xf]
        %v258 = vld [vmem:[%s235 + $0x2c] sm:$0xf]
        %v259 = vld [vmem:[%s235 + $0x30] sm:$0xf]
        %v260 = vld [vmem:[%s235 + $0x34] sm:$0xf]
        %v261 = vld [vmem:[%s235 + $0x38] sm:$0xf]
        %v262 = vld [vmem:[%s235 + $0x3c] sm:$0xf]
        %v263 = vld [vmem:[%s235 + $0x40] sm:$0xf]
        %v264 = vld [vmem:[%s235 + $0x44] sm:$0xf]
        %v265 = vld [vmem:[%s235 + $0x48] sm:$0xf]
        %v266 = vld [vmem:[%s235 + $0x4c] sm:$0xf]
        %v267 = vld [vmem:[%s235 + $0x50] sm:$0xf]
        %v268 = vld [vmem:[%s235 + $0x54] sm:$0xf]
        %v269 = vld [vmem:[%s235 + $0x58] sm:$0xf]
        %v270 = vld [vmem:[%s235 + $0x5c] sm:$0xf]
        %v271 = vld [vmem:[%s235 + $0x60] sm:$0xf]
        %v272 = vld [vmem:[%s235 + $0x64] sm:$0xf]
        %v273 = vld [vmem:[%s235 + $0x68] sm:$0xf]
        %v274 = vld [vmem:[%s235 + $0x6c] sm:$0xf]
        %v275 = vld [vmem:[%s235 + $0x70] sm:$0xf]
        %v276 = vld [vmem:[%s235 + $0x74] sm:$0xf]
        %v277 = vld [vmem:[%s235 + $0x78] sm:$0xf]
        %v278 = vld [vmem:[%s235 + $0x7c] sm:$0xf]
        %v279 = vld [vmem:[%s235 + $0x80] sm:$0xf]
        %v280 = vld [vmem:[%s235 + $0x84] sm:$0xf]
        %v281 = vld [vmem:[%s235 + $0x88] sm:$0xf]
        %v282 = vld [vmem:[%s235 + $0x8c] sm:$0xf]
        %v283 = vld [vmem:[%s235 + $0x90] sm:$0xf]
        %v284 = vld [vmem:[%s235 + $0x94] sm:$0xf]
        %v285 = vld [vmem:[%s235 + $0x98] sm:$0xf]
        %v286 = vld [vmem:[%s235 + $0x9c] sm:$0xf]
        %v287 = vld [vmem:[%s235 + $0xa0] sm:$0xf]
        %v288 = vld [vmem:[%s235 + $0xa4] sm:$0xf]
        %v289 = vld [vmem:[%s235 + $0xa8] sm:$0xf]
        %v290 = vld [vmem:[%s235 + $0xac] sm:$0xf]
        %v291 = vld [vmem:[%s235 + $0xb0] sm:$0xf]
        %v292 = vld [vmem:[%s235 + $0xb4] sm:$0xf]
        %v293 = vld [vmem:[%s235 + $0xb8] sm:$0xf]
        %v294 = vld [vmem:[%s235 + $0xbc] sm:$0xf]
        %v295 = vld [vmem:[%s235 + $0xc0] sm:$0xf]
        %v296 = vld [vmem:[%s235 + $0xc4] sm:$0xf]
        %v297 = vld [vmem:[%s235 + $0xc8] sm:$0xf]
        %v298 = vld [vmem:[%s235 + $0xcc] sm:$0xf]
        %v299 = vld [vmem:[%s235 + $0xd0] sm:$0xf]
        %v300 = vld [vmem:[%s235 + $0xd4] sm:$0xf]
        %v301 = vld [vmem:[%s235 + $0xd8] sm:$0xf]
        %v302 = vld [vmem:[%s235 + $0xdc] sm:$0xf]
        %v303 = vld [vmem:[%s235 + $0xe0] sm:$0xf]
        %v304 = vld [vmem:[%s235 + $0xe4] sm:$0xf]
        %v305 = vld [vmem:[%s235 + $0xe8] sm:$0xf]
        %v306 = vld [vmem:[%s235 + $0xec] sm:$0xf]
        %v307 = vunpack.c.l.bf16 %v247
        %v308 = vunpack.c.l.bf16 %v248
        %v309 = vunpack.c.l.bf16 %v249
        %v310 = vunpack.c.l.bf16 %v250
        %v311 = vunpack.c.l.bf16 %v251
        %v312 = vunpack.c.l.bf16 %v252
        %v313 = vunpack.c.l.bf16 %v253
        %v314 = vunpack.c.l.bf16 %v254
        %v315 = vunpack.c.l.bf16 %v255
        %v316 = vunpack.c.l.bf16 %v256
        %v317 = vunpack.c.l.bf16 %v257
        %v318 = vunpack.c.l.bf16 %v258
        %v319 = vunpack.c.l.bf16 %v259
        %v320 = vunpack.c.l.bf16 %v260
        %v321 = vunpack.c.l.bf16 %v261
        %v322 = vunpack.c.l.bf16 %v262
        %v323 = vunpack.c.l.bf16 %v263
        %v324 = vunpack.c.l.bf16 %v264
        %v325 = vunpack.c.l.bf16 %v265
        %v326 = vunpack.c.l.bf16 %v266
        %v327 = vunpack.c.l.bf16 %v267
        %v328 = vunpack.c.l.bf16 %v268
        %v329 = vunpack.c.l.bf16 %v269
        %v330 = vunpack.c.l.bf16 %v270
        %v331 = vunpack.c.l.bf16 %v271
        %v332 = vunpack.c.l.bf16 %v272
        %v333 = vunpack.c.l.bf16 %v273
        %v334 = vunpack.c.l.bf16 %v274
        %v335 = vunpack.c.l.bf16 %v275
        %v336 = vunpack.c.l.bf16 %v276
        %v337 = vunpack.c.l.bf16 %v277
        %v338 = vunpack.c.l.bf16 %v278
        %v339 = vunpack.c.l.bf16 %v279
        %v340 = vunpack.c.l.bf16 %v280
        %v341 = vunpack.c.l.bf16 %v281
        %v342 = vunpack.c.l.bf16 %v282
        %v343 = vunpack.c.l.bf16 %v283
        %v344 = vunpack.c.l.bf16 %v284
        %v345 = vunpack.c.l.bf16 %v285
        %v346 = vunpack.c.l.bf16 %v286
        %v347 = vunpack.c.l.bf16 %v287
        %v348 = vunpack.c.l.bf16 %v288
        %v349 = vunpack.c.l.bf16 %v289
        %v350 = vunpack.c.l.bf16 %v290
        %v351 = vunpack.c.l.bf16 %v291
        %v352 = vunpack.c.l.bf16 %v292
        %v353 = vunpack.c.l.bf16 %v293
        %v354 = vunpack.c.l.bf16 %v294
        %v355 = vunpack.c.l.bf16 %v295
        %v356 = vunpack.c.l.bf16 %v296
        %v357 = vunpack.c.l.bf16 %v297
        %v358 = vunpack.c.l.bf16 %v298
        %v359 = vunpack.c.l.bf16 %v299
        %v360 = vunpack.c.l.bf16 %v300
        %v361 = vunpack.c.l.bf16 %v301
        %v362 = vunpack.c.l.bf16 %v302
        %v363 = vunpack.c.l.bf16 %v303
        %v364 = vunpack.c.l.bf16 %v304
        %v365 = vunpack.c.l.bf16 %v305
        %v366 = vunpack.c.l.bf16 %v306
        %v367 = vmax.f32 %v307, 0.0
        %v368 = vmax.f32 %v308, 0.0
        %v369 = vmax.f32 %v309, 0.0
        %v370 = vmax.f32 %v310, 0.0
        %v371 = vmax.f32 %v311, 0.0
        %v372 = vmax.f32 %v312, 0.0
        %v373 = vmax.f32 %v313, 0.0
        %v374 = vmax.f32 %v314, 0.0
        %v375 = vmax.f32 %v315, 0.0
        %v376 = vmax.f32 %v316, 0.0
        %v377 = vmax.f32 %v317, 0.0
        %v378 = vmax.f32 %v318, 0.0
        %v379 = vmax.f32 %v319, 0.0
        %v380 = vmax.f32 %v320, 0.0
        %v381 = vmax.f32 %v321, 0.0
        %v382 = vmax.f32 %v322, 0.0
        %v383 = vmax.f32 %v323, 0.0
        %v384 = vmax.f32 %v324, 0.0
        %v385 = vmax.f32 %v325, 0.0
        %v386 = vmax.f32 %v326, 0.0
        %v387 = vmax.f32 %v327, 0.0
        %v388 = vmax.f32 %v328, 0.0
        %v389 = vmax.f32 %v329, 0.0
        %v390 = vmax.f32 %v330, 0.0
        %v391 = vmax.f32 %v331, 0.0
        %v392 = vmax.f32 %v332, 0.0
        %v393 = vmax.f32 %v333, 0.0
        %v394 = vmax.f32 %v334, 0.0
        %v395 = vmax.f32 %v335, 0.0
        %v396 = vmax.f32 %v336, 0.0
        %v397 = vmax.f32 %v337, 0.0
        %v398 = vmax.f32 %v338, 0.0
        %v399 = vmax.f32 %v339, 0.0
        %v400 = vmax.f32 %v340, 0.0
        %v401 = vmax.f32 %v341, 0.0
        %v402 = vmax.f32 %v342, 0.0
        %v403 = vmax.f32 %v343, 0.0
        %v404 = vmax.f32 %v344, 0.0
        %v405 = vmax.f32 %v345, 0.0
        %v406 = vmax.f32 %v346, 0.0
        %v407 = vmax.f32 %v347, 0.0
        %v408 = vmax.f32 %v348, 0.0
        %v409 = vmax.f32 %v349, 0.0
        %v410 = vmax.f32 %v350, 0.0
        %v411 = vmax.f32 %v351, 0.0
        %v412 = vmax.f32 %v352, 0.0
        %v413 = vmax.f32 %v353, 0.0
        %v414 = vmax.f32 %v354, 0.0
        %v415 = vmax.f32 %v355, 0.0
        %v416 = vmax.f32 %v356, 0.0
        %v417 = vmax.f32 %v357, 0.0
        %v418 = vmax.f32 %v358, 0.0
        %v419 = vmax.f32 %v359, 0.0
        %v420 = vmax.f32 %v360, 0.0
        %v421 = vmax.f32 %v361, 0.0
        %v422 = vmax.f32 %v362, 0.0
        %v423 = vmax.f32 %v363, 0.0
        %v424 = vmax.f32 %v364, 0.0
        %v425 = vmax.f32 %v365, 0.0
        %v426 = vmax.f32 %v366, 0.0
        %v427 = vpack.c.bf16 %v368, %v367
        %v428 = vpack.c.bf16 %v370, %v369
        %v429 = vpack.c.bf16 %v372, %v371
        %v430 = vpack.c.bf16 %v374, %v373
        %v431 = vpack.c.bf16 %v376, %v375
        %v432 = vpack.c.bf16 %v378, %v377
        %v433 = vpack.c.bf16 %v380, %v379
        %v434 = vpack.c.bf16 %v382, %v381
        %v435 = vpack.c.bf16 %v384, %v383
        %v436 = vpack.c.bf16 %v386, %v385
        %v437 = vpack.c.bf16 %v388, %v387
        %v438 = vpack.c.bf16 %v390, %v389
        %v439 = vpack.c.bf16 %v392, %v391
        %v440 = vpack.c.bf16 %v394, %v393
        %v441 = vpack.c.bf16 %v396, %v395
        %v442 = vpack.c.bf16 %v398, %v397
        %v443 = vpack.c.bf16 %v400, %v399
        %v444 = vpack.c.bf16 %v402, %v401
        %v445 = vpack.c.bf16 %v404, %v403
        %v446 = vpack.c.bf16 %v406, %v405
        %v447 = vpack.c.bf16 %v408, %v407
        %v448 = vpack.c.bf16 %v410, %v409
        %v449 = vpack.c.bf16 %v412, %v411
        %v450 = vpack.c.bf16 %v414, %v413
        %v451 = vpack.c.bf16 %v416, %v415
        %v452 = vpack.c.bf16 %v418, %v417
        %v453 = vpack.c.bf16 %v420, %v419
        %v454 = vpack.c.bf16 %v422, %v421
        %v455 = vpack.c.bf16 %v424, %v423
        %v456 = vpack.c.bf16 %v426, %v425
        %v457 = vld [vmem:[%s1] sm:$0xf]
        %v458 = vld [vmem:[%s1 + $0x4] sm:$0xf]
        %v459 = vld [vmem:[%s1 + $0x8] sm:$0xf]
        %v460 = vld [vmem:[%s1 + $0xc] sm:$0xf]
        %v461 = vld [vmem:[%s2] sm:$0x1]
        %v463 = vlaneseq
        %v464 = vshrl.u32 %v463, 7
        %v465 = vsub.s32 0, %v464
        %v466 = vrot.slane %v461, %v465
        %v472 = vunpack.c.l.b16 %v457
        %v473 = vunpack.c.l.b16 %v458
        %v474 = vunpack.c.l.b16 %v459
        %v475 = vunpack.c.l.b16 %v460
        %v476 = vpack.c.b16 %v473, %v472
        %v477 = vpack.c.b16 %v475, %v474
        %vm480 = vcmask 261120
        %v482 = vsel %vm480, %v427, 0
        %v485 = vsel %vm480, %v428, 0
        %v488 = vsel %vm480, %v429, 0
        %v491 = vsel %vm480, %v430, 0
        %v494 = vsel %vm480, %v431, 0
        %v497 = vsel %vm480, %v432, 0
        %v500 = vsel %vm480, %v433, 0
        %v503 = vsel %vm480, %v434, 0
        %v506 = vsel %vm480, %v435, 0
        %v509 = vsel %vm480, %v436, 0
        %v512 = vsel %vm480, %v437, 0
        %v515 = vsel %vm480, %v438, 0
        %v518 = vsel %vm480, %v439, 0
        %v521 = vsel %vm480, %v440, 0
        %v524 = vsel %vm480, %v441, 0
        %v527 = vsel %vm480, %v442, 0
        %v530 = vsel %vm480, %v443, 0
        %v533 = vsel %vm480, %v444, 0
        %v536 = vsel %vm480, %v445, 0
        %v539 = vsel %vm480, %v446, 0
        %v542 = vsel %vm480, %v447, 0
        %v545 = vsel %vm480, %v448, 0
        %v548 = vsel %vm480, %v449, 0
        %v551 = vsel %vm480, %v450, 0
        %v554 = vsel %vm480, %v451, 0
        %v557 = vsel %vm480, %v452, 0
        %v560 = vsel %vm480, %v453, 0
        %v563 = vsel %vm480, %v454, 0
        %v566 = vsel %vm480, %v455, 0
        %v569 = vsel %vm480, %v456, 0
        %571 = vmatprep.subr.bf16.mxu0 0
        %572 = vmatpush1.bf16.msra.mxu0 %v476
        %573 = vmatprep.subr.bf16.mxu0 0
        %574 = vmatpush1.bf16.msra.mxu0 %v477
        %575 = vmatprep.subr.bf16.mxu0 0
        %576 = vmatpush1.bf16.msra.mxu0 0
        %577 = vmatprep.subr.bf16.mxu0 0
        %578 = vmatpush1.bf16.msra.mxu0 0
        %579 = vmatprep.subr.bf16.mxu0 0
        %580 = vmatpush1.bf16.msra.mxu0 0
        %581 = vmatprep.subr.bf16.mxu0 0
        %582 = vmatpush1.bf16.msra.mxu0 0
        %583 = vmatprep.subr.bf16.mxu0 0
        %584 = vmatpush1.bf16.msra.mxu0 0
        %585 = vmatprep.subr.bf16.mxu0 0
        %586 = vmatpush1.bf16.msra.mxu0 0
        %587 = vmatprep.subr.bf16.mxu0 0
        %588 = vmatpush1.bf16.msra.mxu0 0
        %589 = vmatprep.subr.bf16.mxu0 0
        %590 = vmatpush1.bf16.msra.mxu0 0
        %591 = vmatprep.subr.bf16.mxu0 0
        %592 = vmatpush1.bf16.msra.mxu0 0
        %593 = vmatprep.subr.bf16.mxu0 0
        %594 = vmatpush1.bf16.msra.mxu0 0
        %595 = vmatprep.subr.bf16.mxu0 0
        %596 = vmatpush1.bf16.msra.mxu0 0
        %597 = vmatprep.subr.bf16.mxu0 0
        %598 = vmatpush1.bf16.msra.mxu0 0
        %599 = vmatprep.subr.bf16.mxu0 0
        %600 = vmatpush1.bf16.msra.mxu0 0
        %601 = vmatprep.subr.bf16.mxu0 0
        %602 = vmatpush1.bf16.msra.mxu0 0
        %603 = vmatprep.mubr.bf16.mxu0 0
        %604 = vmatmul.mubr.bf16.gmra.mrb[0].mxu0 %v482
        %v605 = vpop.f32.mrb[0].mxu0
        %v606 = vadd.f32 %v466, %v605
        %v607 = vpop.f32.mrb[0].mxu0
        %v608 = vpop.f32.mrb[0].mxu0
        %v609 = vadd.f32 %v466, %v608
        %v610 = vpop.f32.mrb[0].mxu0
        %611 = vmatprep.mubr.bf16.mxu0 0
        %612 = vmatmul.mubr.bf16.gmra.mrb[0].mxu0 %v485
        %v613 = vpop.f32.mrb[0].mxu0
        %v614 = vadd.f32 %v466, %v613
        %v615 = vpop.f32.mrb[0].mxu0
        %v616 = vpop.f32.mrb[0].mxu0
        %v617 = vadd.f32 %v466, %v616
        %v618 = vpop.f32.mrb[0].mxu0
        %619 = vmatprep.mubr.bf16.mxu0 0
        %620 = vmatmul.mubr.bf16.gmra.mrb[0].mxu0 %v488
        %v621 = vpop.f32.mrb[0].mxu0
        %v622 = vadd.f32 %v466, %v621
        %v623 = vpop.f32.mrb[0].mxu0
        %v624 = vpop.f32.mrb[0].mxu0
        %v625 = vadd.f32 %v466, %v624
        %v626 = vpop.f32.mrb[0].mxu0
        %627 = vmatprep.mubr.bf16.mxu0 0
        %628 = vmatmul.mubr.bf16.gmra.mrb[0].mxu0 %v491
        %v629 = vpop.f32.mrb[0].mxu0
        %v630 = vadd.f32 %v466, %v629
        %v631 = vpop.f32.mrb[0].mxu0
        %v632 = vpop.f32.mrb[0].mxu0
        %v633 = vadd.f32 %v466, %v632
        %v634 = vpop.f32.mrb[0].mxu0
        %635 = vmatprep.mubr.bf16.mxu0 0
        %636 = vmatmul.mubr.bf16.gmra.mrb[0].mxu0 %v494
        %v637 = vpop.f32.mrb[0].mxu0
        %v638 = vadd.f32 %v466, %v637
        %v639 = vpop.f32.mrb[0].mxu0
        %v640 = vpop.f32.mrb[0].mxu0
        %v641 = vadd.f32 %v466, %v640
        %v642 = vpop.f32.mrb[0].mxu0
        %643 = vmatprep.mubr.bf16.mxu0 0
        %644 = vmatmul.mubr.bf16.gmra.mrb[0].mxu0 %v497
        %v645 = vpop.f32.mrb[0].mxu0
        %v646 = vadd.f32 %v466, %v645
        %v647 = vpop.f32.mrb[0].mxu0
        %v648 = vpop.f32.mrb[0].mxu0
        %v649 = vadd.f32 %v466, %v648
        %v650 = vpop.f32.mrb[0].mxu0
        %651 = vmatprep.mubr.bf16.mxu0 0
        %652 = vmatmul.mubr.bf16.gmra.mrb[0].mxu0 %v500
        %v653 = vpop.f32.mrb[0].mxu0
        %v654 = vadd.f32 %v466, %v653
        %v655 = vpop.f32.mrb[0].mxu0
        %v656 = vpop.f32.mrb[0].mxu0
        %v657 = vadd.f32 %v466, %v656
        %v658 = vpop.f32.mrb[0].mxu0
        %659 = vmatprep.mubr.bf16.mxu0 0
        %660 = vmatmul.mubr.bf16.gmra.mrb[0].mxu0 %v503
        %v661 = vpop.f32.mrb[0].mxu0
        %v662 = vadd.f32 %v466, %v661
        %v663 = vpop.f32.mrb[0].mxu0
        %v664 = vpop.f32.mrb[0].mxu0
        %v665 = vadd.f32 %v466, %v664
        %v666 = vpop.f32.mrb[0].mxu0
        %667 = vmatprep.mubr.bf16.mxu0 0
        %668 = vmatmul.mubr.bf16.gmra.mrb[0].mxu0 %v506
        %v669 = vpop.f32.mrb[0].mxu0
        %v670 = vadd.f32 %v466, %v669
        %v671 = vpop.f32.mrb[0].mxu0
        %v672 = vpop.f32.mrb[0].mxu0
        %v673 = vadd.f32 %v466, %v672
        %v674 = vpop.f32.mrb[0].mxu0
        %675 = vmatprep.mubr.bf16.mxu0 0
        %676 = vmatmul.mubr.bf16.gmra.mrb[0].mxu0 %v509
        %v677 = vpop.f32.mrb[0].mxu0
        %v678 = vadd.f32 %v466, %v677
        %v679 = vpop.f32.mrb[0].mxu0
        %v680 = vpop.f32.mrb[0].mxu0
        %v681 = vadd.f32 %v466, %v680
        %v682 = vpop.f32.mrb[0].mxu0
        %683 = vmatprep.mubr.bf16.mxu0 0
        %684 = vmatmul.mubr.bf16.gmra.mrb[0].mxu0 %v512
        %v685 = vpop.f32.mrb[0].mxu0
        %v686 = vadd.f32 %v466, %v685
        %v687 = vpop.f32.mrb[0].mxu0
        %v688 = vpop.f32.mrb[0].mxu0
        %v689 = vadd.f32 %v466, %v688
        %v690 = vpop.f32.mrb[0].mxu0
        %691 = vmatprep.mubr.bf16.mxu0 0
        %692 = vmatmul.mubr.bf16.gmra.mrb[0].mxu0 %v515
        %v693 = vpop.f32.mrb[0].mxu0
        %v694 = vadd.f32 %v466, %v693
        %v695 = vpop.f32.mrb[0].mxu0
        %v696 = vpop.f32.mrb[0].mxu0
        %v697 = vadd.f32 %v466, %v696
        %v698 = vpop.f32.mrb[0].mxu0
        %699 = vmatprep.mubr.bf16.mxu0 0
        %700 = vmatmul.mubr.bf16.gmra.mrb[0].mxu0 %v518
        %v701 = vpop.f32.mrb[0].mxu0
        %v702 = vadd.f32 %v466, %v701
        %v703 = vpop.f32.mrb[0].mxu0
        %v704 = vpop.f32.mrb[0].mxu0
        %v705 = vadd.f32 %v466, %v704
        %v706 = vpop.f32.mrb[0].mxu0
        %707 = vmatprep.mubr.bf16.mxu0 0
        %708 = vmatmul.mubr.bf16.gmra.mrb[0].mxu0 %v521
        %v709 = vpop.f32.mrb[0].mxu0
        %v710 = vadd.f32 %v466, %v709
        %v711 = vpop.f32.mrb[0].mxu0
        %v712 = vpop.f32.mrb[0].mxu0
        %v713 = vadd.f32 %v466, %v712
        %v714 = vpop.f32.mrb[0].mxu0
        %715 = vmatprep.mubr.bf16.mxu0 0
        %716 = vmatmul.mubr.bf16.gmra.mrb[0].mxu0 %v524
        %v717 = vpop.f32.mrb[0].mxu0
        %v718 = vadd.f32 %v466, %v717
        %v719 = vpop.f32.mrb[0].mxu0
        %v720 = vpop.f32.mrb[0].mxu0
        %v721 = vadd.f32 %v466, %v720
        %v722 = vpop.f32.mrb[0].mxu0
        %723 = vmatprep.mubr.bf16.mxu0 0
        %724 = vmatmul.mubr.bf16.gmra.mrb[0].mxu0 %v527
        %v725 = vpop.f32.mrb[0].mxu0
        %v726 = vadd.f32 %v466, %v725
        %v727 = vpop.f32.mrb[0].mxu0
        %v728 = vpop.f32.mrb[0].mxu0
        %v729 = vadd.f32 %v466, %v728
        %v730 = vpop.f32.mrb[0].mxu0
        %731 = vmatprep.mubr.bf16.mxu0 0
        %732 = vmatmul.mubr.bf16.gmra.mrb[0].mxu0 %v530
        %v733 = vpop.f32.mrb[0].mxu0
        %v734 = vadd.f32 %v466, %v733
        %v735 = vpop.f32.mrb[0].mxu0
        %v736 = vpop.f32.mrb[0].mxu0
        %v737 = vadd.f32 %v466, %v736
        %v738 = vpop.f32.mrb[0].mxu0
        %739 = vmatprep.mubr.bf16.mxu0 0
        %740 = vmatmul.mubr.bf16.gmra.mrb[0].mxu0 %v533
        %v741 = vpop.f32.mrb[0].mxu0
        %v742 = vadd.f32 %v466, %v741
        %v743 = vpop.f32.mrb[0].mxu0
        %v744 = vpop.f32.mrb[0].mxu0
        %v745 = vadd.f32 %v466, %v744
        %v746 = vpop.f32.mrb[0].mxu0
        %747 = vmatprep.mubr.bf16.mxu0 0
        %748 = vmatmul.mubr.bf16.gmra.mrb[0].mxu0 %v536
        %v749 = vpop.f32.mrb[0].mxu0
        %v750 = vadd.f32 %v466, %v749
        %v751 = vpop.f32.mrb[0].mxu0
        %v752 = vpop.f32.mrb[0].mxu0
        %v753 = vadd.f32 %v466, %v752
        %v754 = vpop.f32.mrb[0].mxu0
        %755 = vmatprep.mubr.bf16.mxu0 0
        %756 = vmatmul.mubr.bf16.gmra.mrb[0].mxu0 %v539
        %v757 = vpop.f32.mrb[0].mxu0
        %v758 = vadd.f32 %v466, %v757
        %v759 = vpop.f32.mrb[0].mxu0
        %v760 = vpop.f32.mrb[0].mxu0
        %v761 = vadd.f32 %v466, %v760
        %v762 = vpop.f32.mrb[0].mxu0
        %763 = vmatprep.mubr.bf16.mxu0 0
        %764 = vmatmul.mubr.bf16.gmra.mrb[0].mxu0 %v542
        %v765 = vpop.f32.mrb[0].mxu0
        %v766 = vadd.f32 %v466, %v765
        %v767 = vpop.f32.mrb[0].mxu0
        %v768 = vpop.f32.mrb[0].mxu0
        %v769 = vadd.f32 %v466, %v768
        %v770 = vpop.f32.mrb[0].mxu0
        %771 = vmatprep.mubr.bf16.mxu0 0
        %772 = vmatmul.mubr.bf16.gmra.mrb[0].mxu0 %v545
        %v773 = vpop.f32.mrb[0].mxu0
        %v774 = vadd.f32 %v466, %v773
        %v775 = vpop.f32.mrb[0].mxu0
        %v776 = vpop.f32.mrb[0].mxu0
        %v777 = vadd.f32 %v466, %v776
        %v778 = vpop.f32.mrb[0].mxu0
        %779 = vmatprep.mubr.bf16.mxu0 0
        %780 = vmatmul.mubr.bf16.gmra.mrb[0].mxu0 %v548
        %v781 = vpop.f32.mrb[0].mxu0
        %v782 = vadd.f32 %v466, %v781
        %v783 = vpop.f32.mrb[0].mxu0
        %v784 = vpop.f32.mrb[0].mxu0
        %v785 = vadd.f32 %v466, %v784
        %v786 = vpop.f32.mrb[0].mxu0
        %787 = vmatprep.mubr.bf16.mxu0 0
        %788 = vmatmul.mubr.bf16.gmra.mrb[0].mxu0 %v551
        %v789 = vpop.f32.mrb[0].mxu0
        %v790 = vadd.f32 %v466, %v789
        %v791 = vpop.f32.mrb[0].mxu0
        %v792 = vpop.f32.mrb[0].mxu0
        %v793 = vadd.f32 %v466, %v792
        %v794 = vpop.f32.mrb[0].mxu0
        %795 = vmatprep.mubr.bf16.mxu0 0
        %796 = vmatmul.mubr.bf16.gmra.mrb[0].mxu0 %v554
        %v797 = vpop.f32.mrb[0].mxu0
        %v798 = vadd.f32 %v466, %v797
        %v799 = vpop.f32.mrb[0].mxu0
        %v800 = vpop.f32.mrb[0].mxu0
        %v801 = vadd.f32 %v466, %v800
        %v802 = vpop.f32.mrb[0].mxu0
        %803 = vmatprep.mubr.bf16.mxu0 0
        %804 = vmatmul.mubr.bf16.gmra.mrb[0].mxu0 %v557
        %v805 = vpop.f32.mrb[0].mxu0
        %v806 = vadd.f32 %v466, %v805
        %v807 = vpop.f32.mrb[0].mxu0
        %v808 = vpop.f32.mrb[0].mxu0
        %v809 = vadd.f32 %v466, %v808
        %v810 = vpop.f32.mrb[0].mxu0
        %811 = vmatprep.mubr.bf16.mxu0 0
        %812 = vmatmul.mubr.bf16.gmra.mrb[0].mxu0 %v560
        %v813 = vpop.f32.mrb[0].mxu0
        %v814 = vadd.f32 %v466, %v813
        %v815 = vpop.f32.mrb[0].mxu0
        %v816 = vpop.f32.mrb[0].mxu0
        %v817 = vadd.f32 %v466, %v816
        %v818 = vpop.f32.mrb[0].mxu0
        %819 = vmatprep.mubr.bf16.mxu0 0
        %820 = vmatmul.mubr.bf16.gmra.mrb[0].mxu0 %v563
        %v821 = vpop.f32.mrb[0].mxu0
        %v822 = vadd.f32 %v466, %v821
        %v823 = vpop.f32.mrb[0].mxu0
        %v824 = vpop.f32.mrb[0].mxu0
        %v825 = vadd.f32 %v466, %v824
        %v826 = vpop.f32.mrb[0].mxu0
        %827 = vmatprep.mubr.bf16.mxu0 0
        %828 = vmatmul.mubr.bf16.gmra.mrb[0].mxu0 %v566
        %v829 = vpop.f32.mrb[0].mxu0
        %v830 = vadd.f32 %v466, %v829
        %v831 = vpop.f32.mrb[0].mxu0
        %v832 = vpop.f32.mrb[0].mxu0
        %v833 = vadd.f32 %v466, %v832
        %v834 = vpop.f32.mrb[0].mxu0
        %835 = vmatprep.mubr.bf16.mxu0 0
        %836 = vmatmul.mubr.bf16.gmra.mrb[0].mxu0 %v569
        %v837 = vpop.f32.mrb[0].mxu0
        %v838 = vadd.f32 %v466, %v837
        %v839 = vpop.f32.mrb[0].mxu0
        %v840 = vpop.f32.mrb[0].mxu0
        %v841 = vadd.f32 %v466, %v840
        %v842 = vpop.f32.mrb[0].mxu0
        %843 = vdwg.mxu0
        %v844 = vmax.f32 %v606, 0.0
        %v845 = vmax.f32 %v609, 0.0
        %v846 = vmax.f32 %v614, 0.0
        %v847 = vmax.f32 %v617, 0.0
        %v848 = vmax.f32 %v622, 0.0
        %v849 = vmax.f32 %v625, 0.0
        %v850 = vmax.f32 %v630, 0.0
        %v851 = vmax.f32 %v633, 0.0
        %v852 = vmax.f32 %v638, 0.0
        %v853 = vmax.f32 %v641, 0.0
        %v854 = vmax.f32 %v646, 0.0
        %v855 = vmax.f32 %v649, 0.0
        %v856 = vmax.f32 %v654, 0.0
        %v857 = vmax.f32 %v657, 0.0
        %v858 = vmax.f32 %v662, 0.0
        %v859 = vmax.f32 %v665, 0.0
        %v860 = vmax.f32 %v670, 0.0
        %v861 = vmax.f32 %v673, 0.0
        %v862 = vmax.f32 %v678, 0.0
        %v863 = vmax.f32 %v681, 0.0
        %v864 = vmax.f32 %v686, 0.0
        %v865 = vmax.f32 %v689, 0.0
        %v866 = vmax.f32 %v694, 0.0
        %v867 = vmax.f32 %v697, 0.0
        %v868 = vmax.f32 %v702, 0.0
        %v869 = vmax.f32 %v705, 0.0
        %v870 = vmax.f32 %v710, 0.0
        %v871 = vmax.f32 %v713, 0.0
        %v872 = vmax.f32 %v718, 0.0
        %v873 = vmax.f32 %v721, 0.0
        %v874 = vmax.f32 %v726, 0.0
        %v875 = vmax.f32 %v729, 0.0
        %v876 = vmax.f32 %v734, 0.0
        %v877 = vmax.f32 %v737, 0.0
        %v878 = vmax.f32 %v742, 0.0
        %v879 = vmax.f32 %v745, 0.0
        %v880 = vmax.f32 %v750, 0.0
        %v881 = vmax.f32 %v753, 0.0
        %v882 = vmax.f32 %v758, 0.0
        %v883 = vmax.f32 %v761, 0.0
        %v884 = vmax.f32 %v766, 0.0
        %v885 = vmax.f32 %v769, 0.0
        %v886 = vmax.f32 %v774, 0.0
        %v887 = vmax.f32 %v777, 0.0
        %v888 = vmax.f32 %v782, 0.0
        %v889 = vmax.f32 %v785, 0.0
        %v890 = vmax.f32 %v790, 0.0
        %v891 = vmax.f32 %v793, 0.0
        %v892 = vmax.f32 %v798, 0.0
        %v893 = vmax.f32 %v801, 0.0
        %v894 = vmax.f32 %v806, 0.0
        %v895 = vmax.f32 %v809, 0.0
        %v896 = vmax.f32 %v814, 0.0
        %v897 = vmax.f32 %v817, 0.0
        %v898 = vmax.f32 %v822, 0.0
        %v899 = vmax.f32 %v825, 0.0
        %v900 = vmax.f32 %v830, 0.0
        %v901 = vmax.f32 %v833, 0.0
        %v902 = vmax.f32 %v838, 0.0
        %v903 = vmax.f32 %v841, 0.0
        %v904 = vpack.c.bf16 %v845, %v844
        %v905 = vpack.c.bf16 %v847, %v846
        %v906 = vpack.c.bf16 %v849, %v848
        %v907 = vpack.c.bf16 %v851, %v850
        %v908 = vpack.c.bf16 %v853, %v852
        %v909 = vpack.c.bf16 %v855, %v854
        %v910 = vpack.c.bf16 %v857, %v856
        %v911 = vpack.c.bf16 %v859, %v858
        %v912 = vpack.c.bf16 %v861, %v860
        %v913 = vpack.c.bf16 %v863, %v862
        %v914 = vpack.c.bf16 %v865, %v864
        %v915 = vpack.c.bf16 %v867, %v866
        %v916 = vpack.c.bf16 %v869, %v868
        %v917 = vpack.c.bf16 %v871, %v870
        %v918 = vpack.c.bf16 %v873, %v872
        %v919 = vpack.c.bf16 %v875, %v874
        %v920 = vpack.c.bf16 %v877, %v876
        %v921 = vpack.c.bf16 %v879, %v878
        %v922 = vpack.c.bf16 %v881, %v880
        %v923 = vpack.c.bf16 %v883, %v882
        %v924 = vpack.c.bf16 %v885, %v884
        %v925 = vpack.c.bf16 %v887, %v886
        %v926 = vpack.c.bf16 %v889, %v888
        %v927 = vpack.c.bf16 %v891, %v890
        %v928 = vpack.c.bf16 %v893, %v892
        %v929 = vpack.c.bf16 %v895, %v894
        %v930 = vpack.c.bf16 %v897, %v896
        %v931 = vpack.c.bf16 %v899, %v898
        %v932 = vpack.c.bf16 %v901, %v900
        %v933 = vpack.c.bf16 %v903, %v902
        %v934 = vld [vmem:[%s3] sm:$0xf]
        %v935 = vld [vmem:[%s3 + $0x4] sm:$0xf]
        %v936 = vld [vmem:[%s3 + $0x8] sm:$0xf]
        %v937 = vld [vmem:[%s3 + $0xc] sm:$0xf]
        %v938 = vld [vmem:[%s3 + $0x10] sm:$0xf]
        %v939 = vld [vmem:[%s3 + $0x14] sm:$0xf]
        %v940 = vld [vmem:[%s3 + $0x18] sm:$0xf]
        %v941 = vld [vmem:[%s3 + $0x1c] sm:$0xf]
        %v942 = vld [vmem:[%s4] sm:$0x1]
        %v944 = vlaneseq
        %v945 = vshrl.u32 %v944, 7
        %v946 = vsub.s32 0, %v945
        %v947 = vrot.slane %v942, %v946
        %v957 = vunpack.c.l.b16 %v934
        %v958 = vunpack.c.l.b16 %v935
        %v959 = vunpack.c.l.b16 %v936
        %v960 = vunpack.c.l.b16 %v937
        %v961 = vunpack.c.l.b16 %v938
        %v962 = vunpack.c.l.b16 %v939
        %v963 = vunpack.c.l.b16 %v940
        %v964 = vunpack.c.l.b16 %v941
        %v965 = vpack.c.b16 %v958, %v957
        %v966 = vpack.c.b16 %v960, %v959
        %v967 = vpack.c.b16 %v962, %v961
        %v968 = vpack.c.b16 %v964, %v963
        %vm973 = vcmask 523264
        %v975 = vsel %vm973, %v904, 0
        %v978 = vsel %vm973, %v905, 0
        %v981 = vsel %vm973, %v906, 0
        %v984 = vsel %vm973, %v907, 0
        %v987 = vsel %vm973, %v908, 0
        %v990 = vsel %vm973, %v909, 0
        %v993 = vsel %vm973, %v910, 0
        %v996 = vsel %vm973, %v911, 0
        %v999 = vsel %vm973, %v912, 0
        %v1002 = vsel %vm973, %v913, 0
        %v1005 = vsel %vm973, %v914, 0
        %v1008 = vsel %vm973, %v915, 0
        %v1011 = vsel %vm973, %v916, 0
        %v1014 = vsel %vm973, %v917, 0
        %v1017 = vsel %vm973, %v918, 0
        %v1020 = vsel %vm973, %v919, 0
        %v1023 = vsel %vm973, %v920, 0
        %v1026 = vsel %vm973, %v921, 0
        %v1029 = vsel %vm973, %v922, 0
        %v1032 = vsel %vm973, %v923, 0
        %v1035 = vsel %vm973, %v924, 0
        %v1038 = vsel %vm973, %v925, 0
        %v1041 = vsel %vm973, %v926, 0
        %v1044 = vsel %vm973, %v927, 0
        %v1047 = vsel %vm973, %v928, 0
        %v1050 = vsel %vm973, %v929, 0
        %v1053 = vsel %vm973, %v930, 0
        %v1056 = vsel %vm973, %v931, 0
        %v1059 = vsel %vm973, %v932, 0
        %v1062 = vsel %vm973, %v933, 0
        %1064 = vmatprep.subr.bf16.mxu0 0
        %1065 = vmatpush1.bf16.msra.mxu0 %v965
        %1066 = vmatprep.subr.bf16.mxu0 0
        %1067 = vmatpush1.bf16.msra.mxu0 %v966
        %1068 = vmatprep.subr.bf16.mxu0 0
        %1069 = vmatpush1.bf16.msra.mxu0 %v967
        %1070 = vmatprep.subr.bf16.mxu0 0
        %1071 = vmatpush1.bf16.msra.mxu0 %v968
        %1072 = vmatprep.subr.bf16.mxu0 0
        %1073 = vmatpush1.bf16.msra.mxu0 0
        %1074 = vmatprep.subr.bf16.mxu0 0
        %1075 = vmatpush1.bf16.msra.mxu0 0
        %1076 = vmatprep.subr.bf16.mxu0 0
        %1077 = vmatpush1.bf16.msra.mxu0 0
        %1078 = vmatprep.subr.bf16.mxu0 0
        %1079 = vmatpush1.bf16.msra.mxu0 0
        %1080 = vmatprep.subr.bf16.mxu0 0
        %1081 = vmatpush1.bf16.msra.mxu0 0
        %1082 = vmatprep.subr.bf16.mxu0 0
        %1083 = vmatpush1.bf16.msra.mxu0 0
        %1084 = vmatprep.subr.bf16.mxu0 0
        %1085 = vmatpush1.bf16.msra.mxu0 0
        %1086 = vmatprep.subr.bf16.mxu0 0
        %1087 = vmatpush1.bf16.msra.mxu0 0
        %1088 = vmatprep.subr.bf16.mxu0 0
        %1089 = vmatpush1.bf16.msra.mxu0 0
        %1090 = vmatprep.subr.bf16.mxu0 0
        %1091 = vmatpush1.bf16.msra.mxu0 0
        %1092 = vmatprep.subr.bf16.mxu0 0
        %1093 = vmatpush1.bf16.msra.mxu0 0
        %1094 = vmatprep.subr.bf16.mxu0 0
        %1095 = vmatpush1.bf16.msra.mxu0 0
        %1096 = vmatprep.mubr.bf16.mxu0 0
        %1097 = vmatmul.mubr.bf16.gmra.mrb[0].mxu0 %v975
        %v1098 = vpop.f32.mrb[0].mxu0
        %v1099 = vadd.f32 %v947, %v1098
        %v1100 = vpop.f32.mrb[0].mxu0
        %v1101 = vpop.f32.mrb[0].mxu0
        %v1102 = vadd.f32 %v947, %v1101
        %v1103 = vpop.f32.mrb[0].mxu0
        %1104 = vmatprep.mubr.bf16.mxu0 0
        %1105 = vmatmul.mubr.bf16.gmra.mrb[0].mxu0 %v978
        %v1106 = vpop.f32.mrb[0].mxu0
        %v1107 = vadd.f32 %v947, %v1106
        %v1108 = vpop.f32.mrb[0].mxu0
        %v1109 = vpop.f32.mrb[0].mxu0
        %v1110 = vadd.f32 %v947, %v1109
        %v1111 = vpop.f32.mrb[0].mxu0
        %1112 = vmatprep.mubr.bf16.mxu0 0
        %1113 = vmatmul.mubr.bf16.gmra.mrb[0].mxu0 %v981
        %v1114 = vpop.f32.mrb[0].mxu0
        %v1115 = vadd.f32 %v947, %v1114
        %v1116 = vpop.f32.mrb[0].mxu0
        %v1117 = vpop.f32.mrb[0].mxu0
        %v1118 = vadd.f32 %v947, %v1117
        %v1119 = vpop.f32.mrb[0].mxu0
        %1120 = vmatprep.mubr.bf16.mxu0 0
        %1121 = vmatmul.mubr.bf16.gmra.mrb[0].mxu0 %v984
        %v1122 = vpop.f32.mrb[0].mxu0
        %v1123 = vadd.f32 %v947, %v1122
        %v1124 = vpop.f32.mrb[0].mxu0
        %v1125 = vpop.f32.mrb[0].mxu0
        %v1126 = vadd.f32 %v947, %v1125
        %v1127 = vpop.f32.mrb[0].mxu0
        %1128 = vmatprep.mubr.bf16.mxu0 0
        %1129 = vmatmul.mubr.bf16.gmra.mrb[0].mxu0 %v987
        %v1130 = vpop.f32.mrb[0].mxu0
        %v1131 = vadd.f32 %v947, %v1130
        %v1132 = vpop.f32.mrb[0].mxu0
        %v1133 = vpop.f32.mrb[0].mxu0
        %v1134 = vadd.f32 %v947, %v1133
        %v1135 = vpop.f32.mrb[0].mxu0
        %1136 = vmatprep.mubr.bf16.mxu0 0
        %1137 = vmatmul.mubr.bf16.gmra.mrb[0].mxu0 %v990
        %v1138 = vpop.f32.mrb[0].mxu0
        %v1139 = vadd.f32 %v947, %v1138
        %v1140 = vpop.f32.mrb[0].mxu0
        %v1141 = vpop.f32.mrb[0].mxu0
        %v1142 = vadd.f32 %v947, %v1141
        %v1143 = vpop.f32.mrb[0].mxu0
        %1144 = vmatprep.mubr.bf16.mxu0 0
        %1145 = vmatmul.mubr.bf16.gmra.mrb[0].mxu0 %v993
        %v1146 = vpop.f32.mrb[0].mxu0
        %v1147 = vadd.f32 %v947, %v1146
        %v1148 = vpop.f32.mrb[0].mxu0
        %v1149 = vpop.f32.mrb[0].mxu0
        %v1150 = vadd.f32 %v947, %v1149
        %v1151 = vpop.f32.mrb[0].mxu0
        %1152 = vmatprep.mubr.bf16.mxu0 0
        %1153 = vmatmul.mubr.bf16.gmra.mrb[0].mxu0 %v996
        %v1154 = vpop.f32.mrb[0].mxu0
        %v1155 = vadd.f32 %v947, %v1154
        %v1156 = vpop.f32.mrb[0].mxu0
        %v1157 = vpop.f32.mrb[0].mxu0
        %v1158 = vadd.f32 %v947, %v1157
        %v1159 = vpop.f32.mrb[0].mxu0
        %1160 = vmatprep.mubr.bf16.mxu0 0
        %1161 = vmatmul.mubr.bf16.gmra.mrb[0].mxu0 %v999
        %v1162 = vpop.f32.mrb[0].mxu0
        %v1163 = vadd.f32 %v947, %v1162
        %v1164 = vpop.f32.mrb[0].mxu0
        %v1165 = vpop.f32.mrb[0].mxu0
        %v1166 = vadd.f32 %v947, %v1165
        %v1167 = vpop.f32.mrb[0].mxu0
        %1168 = vmatprep.mubr.bf16.mxu0 0
        %1169 = vmatmul.mubr.bf16.gmra.mrb[0].mxu0 %v1002
        %v1170 = vpop.f32.mrb[0].mxu0
        %v1171 = vadd.f32 %v947, %v1170
        %v1172 = vpop.f32.mrb[0].mxu0
        %v1173 = vpop.f32.mrb[0].mxu0
        %v1174 = vadd.f32 %v947, %v1173
        %v1175 = vpop.f32.mrb[0].mxu0
        %1176 = vmatprep.mubr.bf16.mxu0 0
        %1177 = vmatmul.mubr.bf16.gmra.mrb[0].mxu0 %v1005
        %v1178 = vpop.f32.mrb[0].mxu0
        %v1179 = vadd.f32 %v947, %v1178
        %v1180 = vpop.f32.mrb[0].mxu0
        %v1181 = vpop.f32.mrb[0].mxu0
        %v1182 = vadd.f32 %v947, %v1181
        %v1183 = vpop.f32.mrb[0].mxu0
        %1184 = vmatprep.mubr.bf16.mxu0 0
        %1185 = vmatmul.mubr.bf16.gmra.mrb[0].mxu0 %v1008
        %v1186 = vpop.f32.mrb[0].mxu0
        %v1187 = vadd.f32 %v947, %v1186
        %v1188 = vpop.f32.mrb[0].mxu0
        %v1189 = vpop.f32.mrb[0].mxu0
        %v1190 = vadd.f32 %v947, %v1189
        %v1191 = vpop.f32.mrb[0].mxu0
        %1192 = vmatprep.mubr.bf16.mxu0 0
        %1193 = vmatmul.mubr.bf16.gmra.mrb[0].mxu0 %v1011
        %v1194 = vpop.f32.mrb[0].mxu0
        %v1195 = vadd.f32 %v947, %v1194
        %v1196 = vpop.f32.mrb[0].mxu0
        %v1197 = vpop.f32.mrb[0].mxu0
        %v1198 = vadd.f32 %v947, %v1197
        %v1199 = vpop.f32.mrb[0].mxu0
        %1200 = vmatprep.mubr.bf16.mxu0 0
        %1201 = vmatmul.mubr.bf16.gmra.mrb[0].mxu0 %v1014
        %v1202 = vpop.f32.mrb[0].mxu0
        %v1203 = vadd.f32 %v947, %v1202
        %v1204 = vpop.f32.mrb[0].mxu0
        %v1205 = vpop.f32.mrb[0].mxu0
        %v1206 = vadd.f32 %v947, %v1205
        %v1207 = vpop.f32.mrb[0].mxu0
        %1208 = vmatprep.mubr.bf16.mxu0 0
        %1209 = vmatmul.mubr.bf16.gmra.mrb[0].mxu0 %v1017
        %v1210 = vpop.f32.mrb[0].mxu0
        %v1211 = vadd.f32 %v947, %v1210
        %v1212 = vpop.f32.mrb[0].mxu0
        %v1213 = vpop.f32.mrb[0].mxu0
        %v1214 = vadd.f32 %v947, %v1213
        %v1215 = vpop.f32.mrb[0].mxu0
        %1216 = vmatprep.mubr.bf16.mxu0 0
        %1217 = vmatmul.mubr.bf16.gmra.mrb[0].mxu0 %v1020
        %v1218 = vpop.f32.mrb[0].mxu0
        %v1219 = vadd.f32 %v947, %v1218
        %v1220 = vpop.f32.mrb[0].mxu0
        %v1221 = vpop.f32.mrb[0].mxu0
        %v1222 = vadd.f32 %v947, %v1221
        %v1223 = vpop.f32.mrb[0].mxu0
        %1224 = vmatprep.mubr.bf16.mxu0 0
        %1225 = vmatmul.mubr.bf16.gmra.mrb[0].mxu0 %v1023
        %v1226 = vpop.f32.mrb[0].mxu0
        %v1227 = vadd.f32 %v947, %v1226
        %v1228 = vpop.f32.mrb[0].mxu0
        %v1229 = vpop.f32.mrb[0].mxu0
        %v1230 = vadd.f32 %v947, %v1229
        %v1231 = vpop.f32.mrb[0].mxu0
        %1232 = vmatprep.mubr.bf16.mxu0 0
        %1233 = vmatmul.mubr.bf16.gmra.mrb[0].mxu0 %v1026
        %v1234 = vpop.f32.mrb[0].mxu0
        %v1235 = vadd.f32 %v947, %v1234
        %v1236 = vpop.f32.mrb[0].mxu0
        %v1237 = vpop.f32.mrb[0].mxu0
        %v1238 = vadd.f32 %v947, %v1237
        %v1239 = vpop.f32.mrb[0].mxu0
        %1240 = vmatprep.mubr.bf16.mxu0 0
        %1241 = vmatmul.mubr.bf16.gmra.mrb[0].mxu0 %v1029
        %v1242 = vpop.f32.mrb[0].mxu0
        %v1243 = vadd.f32 %v947, %v1242
        %v1244 = vpop.f32.mrb[0].mxu0
        %v1245 = vpop.f32.mrb[0].mxu0
        %v1246 = vadd.f32 %v947, %v1245
        %v1247 = vpop.f32.mrb[0].mxu0
        %1248 = vmatprep.mubr.bf16.mxu0 0
        %1249 = vmatmul.mubr.bf16.gmra.mrb[0].mxu0 %v1032
        %v1250 = vpop.f32.mrb[0].mxu0
        %v1251 = vadd.f32 %v947, %v1250
        %v1252 = vpop.f32.mrb[0].mxu0
        %v1253 = vpop.f32.mrb[0].mxu0
        %v1254 = vadd.f32 %v947, %v1253
        %v1255 = vpop.f32.mrb[0].mxu0
        %1256 = vmatprep.mubr.bf16.mxu0 0
        %1257 = vmatmul.mubr.bf16.gmra.mrb[0].mxu0 %v1035
        %v1258 = vpop.f32.mrb[0].mxu0
        %v1259 = vadd.f32 %v947, %v1258
        %v1260 = vpop.f32.mrb[0].mxu0
        %v1261 = vpop.f32.mrb[0].mxu0
        %v1262 = vadd.f32 %v947, %v1261
        %v1263 = vpop.f32.mrb[0].mxu0
        %1264 = vmatprep.mubr.bf16.mxu0 0
        %1265 = vmatmul.mubr.bf16.gmra.mrb[0].mxu0 %v1038
        %v1266 = vpop.f32.mrb[0].mxu0
        %v1267 = vadd.f32 %v947, %v1266
        %v1268 = vpop.f32.mrb[0].mxu0
        %v1269 = vpop.f32.mrb[0].mxu0
        %v1270 = vadd.f32 %v947, %v1269
        %v1271 = vpop.f32.mrb[0].mxu0
        %1272 = vmatprep.mubr.bf16.mxu0 0
        %1273 = vmatmul.mubr.bf16.gmra.mrb[0].mxu0 %v1041
        %v1274 = vpop.f32.mrb[0].mxu0
        %v1275 = vadd.f32 %v947, %v1274
        %v1276 = vpop.f32.mrb[0].mxu0
        %v1277 = vpop.f32.mrb[0].mxu0
        %v1278 = vadd.f32 %v947, %v1277
        %v1279 = vpop.f32.mrb[0].mxu0
        %1280 = vmatprep.mubr.bf16.mxu0 0
        %1281 = vmatmul.mubr.bf16.gmra.mrb[0].mxu0 %v1044
        %v1282 = vpop.f32.mrb[0].mxu0
        %v1283 = vadd.f32 %v947, %v1282
        %v1284 = vpop.f32.mrb[0].mxu0
        %v1285 = vpop.f32.mrb[0].mxu0
        %v1286 = vadd.f32 %v947, %v1285
        %v1287 = vpop.f32.mrb[0].mxu0
        %1288 = vmatprep.mubr.bf16.mxu0 0
        %1289 = vmatmul.mubr.bf16.gmra.mrb[0].mxu0 %v1047
        %v1290 = vpop.f32.mrb[0].mxu0
        %v1291 = vadd.f32 %v947, %v1290
        %v1292 = vpop.f32.mrb[0].mxu0
        %v1293 = vpop.f32.mrb[0].mxu0
        %v1294 = vadd.f32 %v947, %v1293
        %v1295 = vpop.f32.mrb[0].mxu0
        %1296 = vmatprep.mubr.bf16.mxu0 0
        %1297 = vmatmul.mubr.bf16.gmra.mrb[0].mxu0 %v1050
        %v1298 = vpop.f32.mrb[0].mxu0
        %v1299 = vadd.f32 %v947, %v1298
        %v1300 = vpop.f32.mrb[0].mxu0
        %v1301 = vpop.f32.mrb[0].mxu0
        %v1302 = vadd.f32 %v947, %v1301
        %v1303 = vpop.f32.mrb[0].mxu0
        %1304 = vmatprep.mubr.bf16.mxu0 0
        %1305 = vmatmul.mubr.bf16.gmra.mrb[0].mxu0 %v1053
        %v1306 = vpop.f32.mrb[0].mxu0
        %v1307 = vadd.f32 %v947, %v1306
        %v1308 = vpop.f32.mrb[0].mxu0
        %v1309 = vpop.f32.mrb[0].mxu0
        %v1310 = vadd.f32 %v947, %v1309
        %v1311 = vpop.f32.mrb[0].mxu0
        %1312 = vmatprep.mubr.bf16.mxu0 0
        %1313 = vmatmul.mubr.bf16.gmra.mrb[0].mxu0 %v1056
        %v1314 = vpop.f32.mrb[0].mxu0
        %v1315 = vadd.f32 %v947, %v1314
        %v1316 = vpop.f32.mrb[0].mxu0
        %v1317 = vpop.f32.mrb[0].mxu0
        %v1318 = vadd.f32 %v947, %v1317
        %v1319 = vpop.f32.mrb[0].mxu0
        %1320 = vmatprep.mubr.bf16.mxu0 0
        %1321 = vmatmul.mubr.bf16.gmra.mrb[0].mxu0 %v1059
        %v1322 = vpop.f32.mrb[0].mxu0
        %v1323 = vadd.f32 %v947, %v1322
        %v1324 = vpop.f32.mrb[0].mxu0
        %v1325 = vpop.f32.mrb[0].mxu0
        %v1326 = vadd.f32 %v947, %v1325
        %v1327 = vpop.f32.mrb[0].mxu0
        %1328 = vmatprep.mubr.bf16.mxu0 0
        %1329 = vmatmul.mubr.bf16.gmra.mrb[0].mxu0 %v1062
        %v1330 = vpop.f32.mrb[0].mxu0
        %v1331 = vadd.f32 %v947, %v1330
        %v1332 = vpop.f32.mrb[0].mxu0
        %v1333 = vpop.f32.mrb[0].mxu0
        %v1334 = vadd.f32 %v947, %v1333
        %v1335 = vpop.f32.mrb[0].mxu0
        %1336 = vdwg.mxu0
        %1337 = vst.msk [vmem:[%s226] sm:$0xff] %vm480, %v1099
        %1338 = vst.msk [vmem:[%s226 + $0x8] sm:$0xff] %vm480, %v1102
        %1339 = vst.msk [vmem:[%s226 + $0x10] sm:$0xff] %vm480, %v1107
        %1340 = vst.msk [vmem:[%s226 + $0x18] sm:$0xff] %vm480, %v1110
        %1341 = vst.msk [vmem:[%s226 + $0x20] sm:$0xff] %vm480, %v1115
        %1342 = vst.msk [vmem:[%s226 + $0x28] sm:$0xff] %vm480, %v1118
        %1343 = vst.msk [vmem:[%s226 + $0x30] sm:$0xff] %vm480, %v1123
        %1344 = vst.msk [vmem:[%s226 + $0x38] sm:$0xff] %vm480, %v1126
        %1345 = vst.msk [vmem:[%s226 + $0x40] sm:$0xff] %vm480, %v1131
        %1346 = vst.msk [vmem:[%s226 + $0x48] sm:$0xff] %vm480, %v1134
        %1347 = vst.msk [vmem:[%s226 + $0x50] sm:$0xff] %vm480, %v1139
        %1348 = vst.msk [vmem:[%s226 + $0x58] sm:$0xff] %vm480, %v1142
        %1349 = vst.msk [vmem:[%s226 + $0x60] sm:$0xff] %vm480, %v1147
        %1350 = vst.msk [vmem:[%s226 + $0x68] sm:$0xff] %vm480, %v1150
        %1351 = vst.msk [vmem:[%s226 + $0x70] sm:$0xff] %vm480, %v1155
        %1352 = vst.msk [vmem:[%s226 + $0x78] sm:$0xff] %vm480, %v1158
        %1353 = vst.msk [vmem:[%s226 + $0x80] sm:$0xff] %vm480, %v1163
        %1354 = vst.msk [vmem:[%s226 + $0x88] sm:$0xff] %vm480, %v1166
        %1355 = vst.msk [vmem:[%s226 + $0x90] sm:$0xff] %vm480, %v1171
        %1356 = vst.msk [vmem:[%s226 + $0x98] sm:$0xff] %vm480, %v1174
        %1357 = vst.msk [vmem:[%s226 + $0xa0] sm:$0xff] %vm480, %v1179
        %1358 = vst.msk [vmem:[%s226 + $0xa8] sm:$0xff] %vm480, %v1182
        %1359 = vst.msk [vmem:[%s226 + $0xb0] sm:$0xff] %vm480, %v1187
        %1360 = vst.msk [vmem:[%s226 + $0xb8] sm:$0xff] %vm480, %v1190
        %1361 = vst.msk [vmem:[%s226 + $0xc0] sm:$0xff] %vm480, %v1195
        %1362 = vst.msk [vmem:[%s226 + $0xc8] sm:$0xff] %vm480, %v1198
        %1363 = vst.msk [vmem:[%s226 + $0xd0] sm:$0xff] %vm480, %v1203
        %1364 = vst.msk [vmem:[%s226 + $0xd8] sm:$0xff] %vm480, %v1206
        %1365 = vst.msk [vmem:[%s226 + $0xe0] sm:$0xff] %vm480, %v1211
        %1366 = vst.msk [vmem:[%s226 + $0xe8] sm:$0xff] %vm480, %v1214
        %1367 = vst.msk [vmem:[%s226 + $0xf0] sm:$0xff] %vm480, %v1219
        %1368 = vst.msk [vmem:[%s226 + $0xf8] sm:$0xff] %vm480, %v1222
        %1369 = vst.msk [vmem:[%s226 + $0x100] sm:$0xff] %vm480, %v1227
        %1370 = vst.msk [vmem:[%s226 + $0x108] sm:$0xff] %vm480, %v1230
        %1371 = vst.msk [vmem:[%s226 + $0x110] sm:$0xff] %vm480, %v1235
        %1372 = vst.msk [vmem:[%s226 + $0x118] sm:$0xff] %vm480, %v1238
        %1373 = vst.msk [vmem:[%s226 + $0x120] sm:$0xff] %vm480, %v1243
        %1374 = vst.msk [vmem:[%s226 + $0x128] sm:$0xff] %vm480, %v1246
        %1375 = vst.msk [vmem:[%s226 + $0x130] sm:$0xff] %vm480, %v1251
        %1376 = vst.msk [vmem:[%s226 + $0x138] sm:$0xff] %vm480, %v1254
        %1377 = vst.msk [vmem:[%s226 + $0x140] sm:$0xff] %vm480, %v1259
        %1378 = vst.msk [vmem:[%s226 + $0x148] sm:$0xff] %vm480, %v1262
        %1379 = vst.msk [vmem:[%s226 + $0x150] sm:$0xff] %vm480, %v1267
        %1380 = vst.msk [vmem:[%s226 + $0x158] sm:$0xff] %vm480, %v1270
        %1381 = vst.msk [vmem:[%s226 + $0x160] sm:$0xff] %vm480, %v1275
        %1382 = vst.msk [vmem:[%s226 + $0x168] sm:$0xff] %vm480, %v1278
        %1383 = vst.msk [vmem:[%s226 + $0x170] sm:$0xff] %vm480, %v1283
        %1384 = vst.msk [vmem:[%s226 + $0x178] sm:$0xff] %vm480, %v1286
        %1385 = vst.msk [vmem:[%s226 + $0x180] sm:$0xff] %vm480, %v1291
        %1386 = vst.msk [vmem:[%s226 + $0x188] sm:$0xff] %vm480, %v1294
        %1387 = vst.msk [vmem:[%s226 + $0x190] sm:$0xff] %vm480, %v1299
        %1388 = vst.msk [vmem:[%s226 + $0x198] sm:$0xff] %vm480, %v1302
        %1389 = vst.msk [vmem:[%s226 + $0x1a0] sm:$0xff] %vm480, %v1307
        %1390 = vst.msk [vmem:[%s226 + $0x1a8] sm:$0xff] %vm480, %v1310
        %1391 = vst.msk [vmem:[%s226 + $0x1b0] sm:$0xff] %vm480, %v1315
        %1392 = vst.msk [vmem:[%s226 + $0x1b8] sm:$0xff] %vm480, %v1318
        %1393 = vst.msk [vmem:[%s226 + $0x1c0] sm:$0xff] %vm480, %v1323
        %1394 = vst.msk [vmem:[%s226 + $0x1c8] sm:$0xff] %vm480, %v1326
        %1395 = vst.msk [vmem:[%s226 + $0x1d0] sm:$0xff] %vm480, %v1331
        %1396 = vst.msk [vmem:[%s226 + $0x1d8] sm:$0xff] %vm480, %v1334
        %s1397 = sand.u32 %s134, 1
        %s1398 = sand.u32 %s134, 1
        %s1399 = smul.addr %s1398, 480
        %s1400 = scalar_lea.vmem [#allocation2], %s1399
        // Predicated region
        $region41: #{semantic_forward.1} parent=39 // pred_check
          %p1401 = pneg %p144
        $region42: #{semantic_forward.1} parent=39 // pred_check_branch
          %1403 = sbr.rel (%p1401) target = $region44
        $region43: #{semantic_forward.1} parent=39 // pred_region
          %s1404 = smul.u32 60, %s16
          %s1405 = ssub.s32 118, %s1404
          %p1406 = scmp.lt.s32.totalorder %s1405, 60
          %s1407 = scalar_select %p1406, %s1405, 60
          %s1408 = smul.u32 128, %s1407
          %p1409 = scmp.ne.s32.totalorder 0, %s1408
          %s1410 = smul.addr %s1404, 8
          %s1411 = scalar_lea.vmem %s5, %s1410
          // Predicated region
          $region45: #{semantic_forward.1} parent=43 // pred_check
            %p1412 = pneg %p1409
          $region46: #{semantic_forward.1} parent=43 // pred_check_branch
            %1414 = sbr.rel (%p1412) target = $region48
          $region47: #{semantic_forward.1} parent=43 // pred_region
            // Predicated region
            $region49: #{semantic_forward.1} parent=47 // pred_check
              _
            $region50: #{semantic_forward.1} parent=47 // pred_check_branch
              %1416 = sbr.rel (0) target = $region52
            $region51: #{semantic_forward.1} parent=47 // pred_region
              // Predicated region
              $region71: #{semantic_forward.1} parent=51 // pred_check
                _
              $region72: #{semantic_forward.1} parent=51 // pred_check_branch
                %1584 = sbr.rel (0) target = $region74
              $region73: #{semantic_forward.1} parent=51 // pred_region
                %s1585 = sdiv.u32.pop %s1407, 60
                %s1586 = srem.u32.pop %s1407, 60
                // While loop
                $region75: #{semantic_forward.1} parent=73 // loop_pre_header
                  _
                $region76: #{semantic_forward.1} parent=73 // loop_header
                  %s1588 = sphi 0, %s1590
                  %p1589 = scmp.ge.s32.totalorder %s1588, %s1585
                  %s1593 = sphi 0, %s1718
                  %s1594 = sphi %s1400, %s1721
                  %s1595 = sphi %s1411, %s1722
                $region77: #{semantic_forward.1} parent=73 // loop_header_branch
                  %1592 = sbr.rel (%p1589) target = $region81
                $region78: #{semantic_forward.1} parent=73 // loop_body
                  %v1596 = vld [vmem:[%s1594] sm:$0xff]
                  %1597 = vst [vmem:[%s1595] sm:$0xff] %v1596
                  %v1598 = vld [vmem:[%s1594 + $0x8] sm:$0xff]
                  %1599 = vst [vmem:[%s1595 + $0x8] sm:$0xff] %v1598
                  %v1600 = vld [vmem:[%s1594 + $0x10] sm:$0xff]
                  %1601 = vst [vmem:[%s1595 + $0x10] sm:$0xff] %v1600
                  %v1602 = vld [vmem:[%s1594 + $0x18] sm:$0xff]
                  %1603 = vst [vmem:[%s1595 + $0x18] sm:$0xff] %v1602
                  %v1604 = vld [vmem:[%s1594 + $0x20] sm:$0xff]
                  %1605 = vst [vmem:[%s1595 + $0x20] sm:$0xff] %v1604
                  %v1606 = vld [vmem:[%s1594 + $0x28] sm:$0xff]
                  %1607 = vst [vmem:[%s1595 + $0x28] sm:$0xff] %v1606
                  %v1608 = vld [vmem:[%s1594 + $0x30] sm:$0xff]
                  %1609 = vst [vmem:[%s1595 + $0x30] sm:$0xff] %v1608
                  %v1610 = vld [vmem:[%s1594 + $0x38] sm:$0xff]
                  %1611 = vst [vmem:[%s1595 + $0x38] sm:$0xff] %v1610
                  %v1612 = vld [vmem:[%s1594 + $0x40] sm:$0xff]
                  %1613 = vst [vmem:[%s1595 + $0x40] sm:$0xff] %v1612
                  %v1614 = vld [vmem:[%s1594 + $0x48] sm:$0xff]
                  %1615 = vst [vmem:[%s1595 + $0x48] sm:$0xff] %v1614
                  %v1616 = vld [vmem:[%s1594 + $0x50] sm:$0xff]
                  %1617 = vst [vmem:[%s1595 + $0x50] sm:$0xff] %v1616
                  %v1618 = vld [vmem:[%s1594 + $0x58] sm:$0xff]
                  %1619 = vst [vmem:[%s1595 + $0x58] sm:$0xff] %v1618
                  %v1620 = vld [vmem:[%s1594 + $0x60] sm:$0xff]
                  %1621 = vst [vmem:[%s1595 + $0x60] sm:$0xff] %v1620
                  %v1622 = vld [vmem:[%s1594 + $0x68] sm:$0xff]
                  %1623 = vst [vmem:[%s1595 + $0x68] sm:$0xff] %v1622
                  %v1624 = vld [vmem:[%s1594 + $0x70] sm:$0xff]
                  %1625 = vst [vmem:[%s1595 + $0x70] sm:$0xff] %v1624
                  %v1626 = vld [vmem:[%s1594 + $0x78] sm:$0xff]
                  %1627 = vst [vmem:[%s1595 + $0x78] sm:$0xff] %v1626
                  %v1628 = vld [vmem:[%s1594 + $0x80] sm:$0xff]
                  %1629 = vst [vmem:[%s1595 + $0x80] sm:$0xff] %v1628
                  %v1630 = vld [vmem:[%s1594 + $0x88] sm:$0xff]
                  %1631 = vst [vmem:[%s1595 + $0x88] sm:$0xff] %v1630
                  %v1632 = vld [vmem:[%s1594 + $0x90] sm:$0xff]
                  %1633 = vst [vmem:[%s1595 + $0x90] sm:$0xff] %v1632
                  %v1634 = vld [vmem:[%s1594 + $0x98] sm:$0xff]
                  %1635 = vst [vmem:[%s1595 + $0x98] sm:$0xff] %v1634
                  %v1636 = vld [vmem:[%s1594 + $0xa0] sm:$0xff]
                  %1637 = vst [vmem:[%s1595 + $0xa0] sm:$0xff] %v1636
                  %v1638 = vld [vmem:[%s1594 + $0xa8] sm:$0xff]
                  %1639 = vst [vmem:[%s1595 + $0xa8] sm:$0xff] %v1638
                  %v1640 = vld [vmem:[%s1594 + $0xb0] sm:$0xff]
                  %1641 = vst [vmem:[%s1595 + $0xb0] sm:$0xff] %v1640
                  %v1642 = vld [vmem:[%s1594 + $0xb8] sm:$0xff]
                  %1643 = vst [vmem:[%s1595 + $0xb8] sm:$0xff] %v1642
                  %v1644 = vld [vmem:[%s1594 + $0xc0] sm:$0xff]
                  %1645 = vst [vmem:[%s1595 + $0xc0] sm:$0xff] %v1644
                  %v1646 = vld [vmem:[%s1594 + $0xc8] sm:$0xff]
                  %1647 = vst [vmem:[%s1595 + $0xc8] sm:$0xff] %v1646
                  %v1648 = vld [vmem:[%s1594 + $0xd0] sm:$0xff]
                  %1649 = vst [vmem:[%s1595 + $0xd0] sm:$0xff] %v1648
                  %v1650 = vld [vmem:[%s1594 + $0xd8] sm:$0xff]
                  %1651 = vst [vmem:[%s1595 + $0xd8] sm:$0xff] %v1650
                  %v1652 = vld [vmem:[%s1594 + $0xe0] sm:$0xff]
                  %1653 = vst [vmem:[%s1595 + $0xe0] sm:$0xff] %v1652
                  %v1654 = vld [vmem:[%s1594 + $0xe8] sm:$0xff]
                  %1655 = vst [vmem:[%s1595 + $0xe8] sm:$0xff] %v1654
                  %v1656 = vld [vmem:[%s1594 + $0xf0] sm:$0xff]
                  %1657 = vst [vmem:[%s1595 + $0xf0] sm:$0xff] %v1656
                  %v1658 = vld [vmem:[%s1594 + $0xf8] sm:$0xff]
                  %1659 = vst [vmem:[%s1595 + $0xf8] sm:$0xff] %v1658
                  %v1660 = vld [vmem:[%s1594 + $0x100] sm:$0xff]
                  %1661 = vst [vmem:[%s1595 + $0x100] sm:$0xff] %v1660
                  %v1662 = vld [vmem:[%s1594 + $0x108] sm:$0xff]
                  %1663 = vst [vmem:[%s1595 + $0x108] sm:$0xff] %v1662
                  %v1664 = vld [vmem:[%s1594 + $0x110] sm:$0xff]
                  %1665 = vst [vmem:[%s1595 + $0x110] sm:$0xff] %v1664
                  %v1666 = vld [vmem:[%s1594 + $0x118] sm:$0xff]
                  %1667 = vst [vmem:[%s1595 + $0x118] sm:$0xff] %v1666
                  %v1668 = vld [vmem:[%s1594 + $0x120] sm:$0xff]
                  %1669 = vst [vmem:[%s1595 + $0x120] sm:$0xff] %v1668
                  %v1670 = vld [vmem:[%s1594 + $0x128] sm:$0xff]
                  %1671 = vst [vmem:[%s1595 + $0x128] sm:$0xff] %v1670
                  %v1672 = vld [vmem:[%s1594 + $0x130] sm:$0xff]
                  %1673 = vst [vmem:[%s1595 + $0x130] sm:$0xff] %v1672
                  %v1674 = vld [vmem:[%s1594 + $0x138] sm:$0xff]
                  %1675 = vst [vmem:[%s1595 + $0x138] sm:$0xff] %v1674
                  %v1676 = vld [vmem:[%s1594 + $0x140] sm:$0xff]
                  %1677 = vst [vmem:[%s1595 + $0x140] sm:$0xff] %v1676
                  %v1678 = vld [vmem:[%s1594 + $0x148] sm:$0xff]
                  %1679 = vst [vmem:[%s1595 + $0x148] sm:$0xff] %v1678
                  %v1680 = vld [vmem:[%s1594 + $0x150] sm:$0xff]
                  %1681 = vst [vmem:[%s1595 + $0x150] sm:$0xff] %v1680
                  %v1682 = vld [vmem:[%s1594 + $0x158] sm:$0xff]
                  %1683 = vst [vmem:[%s1595 + $0x158] sm:$0xff] %v1682
                  %v1684 = vld [vmem:[%s1594 + $0x160] sm:$0xff]
                  %1685 = vst [vmem:[%s1595 + $0x160] sm:$0xff] %v1684
                  %v1686 = vld [vmem:[%s1594 + $0x168] sm:$0xff]
                  %1687 = vst [vmem:[%s1595 + $0x168] sm:$0xff] %v1686
                  %v1688 = vld [vmem:[%s1594 + $0x170] sm:$0xff]
                  %1689 = vst [vmem:[%s1595 + $0x170] sm:$0xff] %v1688
                  %v1690 = vld [vmem:[%s1594 + $0x178] sm:$0xff]
                  %1691 = vst [vmem:[%s1595 + $0x178] sm:$0xff] %v1690
                  %v1692 = vld [vmem:[%s1594 + $0x180] sm:$0xff]
                  %1693 = vst [vmem:[%s1595 + $0x180] sm:$0xff] %v1692
                  %v1694 = vld [vmem:[%s1594 + $0x188] sm:$0xff]
                  %1695 = vst [vmem:[%s1595 + $0x188] sm:$0xff] %v1694
                  %v1696 = vld [vmem:[%s1594 + $0x190] sm:$0xff]
                  %1697 = vst [vmem:[%s1595 + $0x190] sm:$0xff] %v1696
                  %v1698 = vld [vmem:[%s1594 + $0x198] sm:$0xff]
                  %1699 = vst [vmem:[%s1595 + $0x198] sm:$0xff] %v1698
                  %v1700 = vld [vmem:[%s1594 + $0x1a0] sm:$0xff]
                  %1701 = vst [vmem:[%s1595 + $0x1a0] sm:$0xff] %v1700
                  %v1702 = vld [vmem:[%s1594 + $0x1a8] sm:$0xff]
                  %1703 = vst [vmem:[%s1595 + $0x1a8] sm:$0xff] %v1702
                  %v1704 = vld [vmem:[%s1594 + $0x1b0] sm:$0xff]
                  %1705 = vst [vmem:[%s1595 + $0x1b0] sm:$0xff] %v1704
                  %v1706 = vld [vmem:[%s1594 + $0x1b8] sm:$0xff]
                  %1707 = vst [vmem:[%s1595 + $0x1b8] sm:$0xff] %v1706
                  %v1708 = vld [vmem:[%s1594 + $0x1c0] sm:$0xff]
                  %1709 = vst [vmem:[%s1595 + $0x1c0] sm:$0xff] %v1708
                  %v1710 = vld [vmem:[%s1594 + $0x1c8] sm:$0xff]
                  %1711 = vst [vmem:[%s1595 + $0x1c8] sm:$0xff] %v1710
                  %v1712 = vld [vmem:[%s1594 + $0x1d0] sm:$0xff]
                  %1713 = vst [vmem:[%s1595 + $0x1d0] sm:$0xff] %v1712
                  %v1714 = vld [vmem:[%s1594 + $0x1d8] sm:$0xff]
                  %1715 = vst [vmem:[%s1595 + $0x1d8] sm:$0xff] %v1714
                  %s1716 = sadd.s32 1, %s1593
                  %p1717 = scmp.ge.s32.totalorder %s1716, %s1585
                  %s1718 = scalar_select %p1717, 0, %s1716
                  %s1719 = smul.u32 %s1718, 480
                  %s1720 = smul.u32 %s1718, 480
                  %s1721 = scalar_lea.vmem %s1400, %s1719 [#allocation2]
                  %s1722 = scalar_lea.vmem %s1411, %s1720
                $region79: #{semantic_forward.1} parent=73 // loop_footer
                  %s1590 = sadd.s32 %s1588, 1
                $region80: #{semantic_forward.1} parent=73 // loop_footer_branch
                  %1587 = sbr.rel target = $region76
                $region81: #{semantic_forward.1} parent=73 // loop_exit
                  _
                %s1723 = sdiv.u32.pop %s1407, 60
                %s1724 = srem.u32.pop %s1407, 60
                %s1725 = smul.u32 %s1723, 60
                %s1726 = smul.u32 8, %s1725
                %s1727 = scalar_lea.vmem %s1400, %s1726 [#allocation2]
                %s1728 = smul.u32 8, %s1725
                %s1729 = scalar_lea.vmem %s1411, %s1728
                // While loop
                $region82: #{semantic_forward.1} parent=73 // loop_pre_header
                  _
                $region83: #{semantic_forward.1} parent=73 // loop_header
                  %s1731 = sphi 0, %s1733
                  %p1732 = scmp.ge.s32.totalorder %s1731, %s1724
                  %s1736 = sphi 0, %s1743
                  %s1737 = sphi %s1727, %s1746
                  %s1738 = sphi %s1729, %s1747
                $region84: #{semantic_forward.1} parent=73 // loop_header_branch
                  %1735 = sbr.rel (%p1732) target = $region88
                $region85: #{semantic_forward.1} parent=73 // loop_body
                  %v1739 = vld [vmem:[%s1737] sm:$0xff]
                  %1740 = vst [vmem:[%s1738] sm:$0xff] %v1739
                  %s1741 = sadd.s32 1, %s1736
                  %p1742 = scmp.ge.s32.totalorder %s1741, %s1724
                  %s1743 = scalar_select %p1742, 0, %s1741
                  %s1744 = smul.u32 %s1743, 8
                  %s1745 = smul.u32 %s1743, 8
                  %s1746 = scalar_lea.vmem %s1727, %s1744 [#allocation2]
                  %s1747 = scalar_lea.vmem %s1729, %s1745
                $region86: #{semantic_forward.1} parent=73 // loop_footer
                  %s1733 = sadd.s32 %s1731, 1
                $region87: #{semantic_forward.1} parent=73 // loop_footer_branch
                  %1730 = sbr.rel target = $region83
                $region88: #{semantic_forward.1} parent=73 // loop_exit
                  _
              $region74: #{semantic_forward.1} parent=51 // pred_fallthru
                _
              // Predicated region
              $region89: #{semantic_forward.1} parent=51 // pred_check
                _
              $region90: #{semantic_forward.1} parent=51 // pred_check_branch
                %1749 = sbr.rel target = $region92
              $region91: #{semantic_forward.1} parent=51 // pred_region
                _
              $region92: #{semantic_forward.1} parent=51 // pred_fallthru
                _
            $region52: #{semantic_forward.1} parent=47 // pred_fallthru
              _
            // Predicated region
            $region53: #{semantic_forward.1} parent=47 // pred_check
              _
            $region54: #{semantic_forward.1} parent=47 // pred_check_branch
              %1418 = sbr.rel target = $region56
            $region55: #{semantic_forward.1} parent=47 // pred_region
              %s1420 = sdiv.u32.pop %s1407, 60
              %s1421 = srem.u32.pop %s1407, 60
              // While loop
              $region57: #{semantic_forward.1} parent=55 // loop_pre_header
                _
              $region58: #{semantic_forward.1} parent=55 // loop_header
                %s1423 = sphi 0, %s1425
                %p1424 = scmp.ge.s32.totalorder %s1423, %s1420
                %s1428 = sphi 0, %s1553
                %s1429 = sphi %s1400, %s1556
                %s1430 = sphi %s1411, %s1557
              $region59: #{semantic_forward.1} parent=55 // loop_header_branch
                %1427 = sbr.rel (%p1424) target = $region63
              $region60: #{semantic_forward.1} parent=55 // loop_body
                %v1431 = vld [vmem:[%s1429] sm:$0xff]
                %1432 = vst [vmem:[%s1430] sm:$0xff] %v1431
                %v1433 = vld [vmem:[%s1429 + $0x8] sm:$0xff]
                %1434 = vst [vmem:[%s1430 + $0x8] sm:$0xff] %v1433
                %v1435 = vld [vmem:[%s1429 + $0x10] sm:$0xff]
                %1436 = vst [vmem:[%s1430 + $0x10] sm:$0xff] %v1435
                %v1437 = vld [vmem:[%s1429 + $0x18] sm:$0xff]
                %1438 = vst [vmem:[%s1430 + $0x18] sm:$0xff] %v1437
                %v1439 = vld [vmem:[%s1429 + $0x20] sm:$0xff]
                %1440 = vst [vmem:[%s1430 + $0x20] sm:$0xff] %v1439
                %v1441 = vld [vmem:[%s1429 + $0x28] sm:$0xff]
                %1442 = vst [vmem:[%s1430 + $0x28] sm:$0xff] %v1441
                %v1443 = vld [vmem:[%s1429 + $0x30] sm:$0xff]
                %1444 = vst [vmem:[%s1430 + $0x30] sm:$0xff] %v1443
                %v1445 = vld [vmem:[%s1429 + $0x38] sm:$0xff]
                %1446 = vst [vmem:[%s1430 + $0x38] sm:$0xff] %v1445
                %v1447 = vld [vmem:[%s1429 + $0x40] sm:$0xff]
                %1448 = vst [vmem:[%s1430 + $0x40] sm:$0xff] %v1447
                %v1449 = vld [vmem:[%s1429 + $0x48] sm:$0xff]
                %1450 = vst [vmem:[%s1430 + $0x48] sm:$0xff] %v1449
                %v1451 = vld [vmem:[%s1429 + $0x50] sm:$0xff]
                %1452 = vst [vmem:[%s1430 + $0x50] sm:$0xff] %v1451
                %v1453 = vld [vmem:[%s1429 + $0x58] sm:$0xff]
                %1454 = vst [vmem:[%s1430 + $0x58] sm:$0xff] %v1453
                %v1455 = vld [vmem:[%s1429 + $0x60] sm:$0xff]
                %1456 = vst [vmem:[%s1430 + $0x60] sm:$0xff] %v1455
                %v1457 = vld [vmem:[%s1429 + $0x68] sm:$0xff]
                %1458 = vst [vmem:[%s1430 + $0x68] sm:$0xff] %v1457
                %v1459 = vld [vmem:[%s1429 + $0x70] sm:$0xff]
                %1460 = vst [vmem:[%s1430 + $0x70] sm:$0xff] %v1459
                %v1461 = vld [vmem:[%s1429 + $0x78] sm:$0xff]
                %1462 = vst [vmem:[%s1430 + $0x78] sm:$0xff] %v1461
                %v1463 = vld [vmem:[%s1429 + $0x80] sm:$0xff]
                %1464 = vst [vmem:[%s1430 + $0x80] sm:$0xff] %v1463
                %v1465 = vld [vmem:[%s1429 + $0x88] sm:$0xff]
                %1466 = vst [vmem:[%s1430 + $0x88] sm:$0xff] %v1465
                %v1467 = vld [vmem:[%s1429 + $0x90] sm:$0xff]
                %1468 = vst [vmem:[%s1430 + $0x90] sm:$0xff] %v1467
                %v1469 = vld [vmem:[%s1429 + $0x98] sm:$0xff]
                %1470 = vst [vmem:[%s1430 + $0x98] sm:$0xff] %v1469
                %v1471 = vld [vmem:[%s1429 + $0xa0] sm:$0xff]
                %1472 = vst [vmem:[%s1430 + $0xa0] sm:$0xff] %v1471
                %v1473 = vld [vmem:[%s1429 + $0xa8] sm:$0xff]
                %1474 = vst [vmem:[%s1430 + $0xa8] sm:$0xff] %v1473
                %v1475 = vld [vmem:[%s1429 + $0xb0] sm:$0xff]
                %1476 = vst [vmem:[%s1430 + $0xb0] sm:$0xff] %v1475
                %v1477 = vld [vmem:[%s1429 + $0xb8] sm:$0xff]
                %1478 = vst [vmem:[%s1430 + $0xb8] sm:$0xff] %v1477
                %v1479 = vld [vmem:[%s1429 + $0xc0] sm:$0xff]
                %1480 = vst [vmem:[%s1430 + $0xc0] sm:$0xff] %v1479
                %v1481 = vld [vmem:[%s1429 + $0xc8] sm:$0xff]
                %1482 = vst [vmem:[%s1430 + $0xc8] sm:$0xff] %v1481
                %v1483 = vld [vmem:[%s1429 + $0xd0] sm:$0xff]
                %1484 = vst [vmem:[%s1430 + $0xd0] sm:$0xff] %v1483
                %v1485 = vld [vmem:[%s1429 + $0xd8] sm:$0xff]
                %1486 = vst [vmem:[%s1430 + $0xd8] sm:$0xff] %v1485
                %v1487 = vld [vmem:[%s1429 + $0xe0] sm:$0xff]
                %1488 = vst [vmem:[%s1430 + $0xe0] sm:$0xff] %v1487
                %v1489 = vld [vmem:[%s1429 + $0xe8] sm:$0xff]
                %1490 = vst [vmem:[%s1430 + $0xe8] sm:$0xff] %v1489
                %v1491 = vld [vmem:[%s1429 + $0xf0] sm:$0xff]
                %1492 = vst [vmem:[%s1430 + $0xf0] sm:$0xff] %v1491
                %v1493 = vld [vmem:[%s1429 + $0xf8] sm:$0xff]
                %1494 = vst [vmem:[%s1430 + $0xf8] sm:$0xff] %v1493
                %v1495 = vld [vmem:[%s1429 + $0x100] sm:$0xff]
                %1496 = vst [vmem:[%s1430 + $0x100] sm:$0xff] %v1495
                %v1497 = vld [vmem:[%s1429 + $0x108] sm:$0xff]
                %1498 = vst [vmem:[%s1430 + $0x108] sm:$0xff] %v1497
                %v1499 = vld [vmem:[%s1429 + $0x110] sm:$0xff]
                %1500 = vst [vmem:[%s1430 + $0x110] sm:$0xff] %v1499
                %v1501 = vld [vmem:[%s1429 + $0x118] sm:$0xff]
                %1502 = vst [vmem:[%s1430 + $0x118] sm:$0xff] %v1501
                %v1503 = vld [vmem:[%s1429 + $0x120] sm:$0xff]
                %1504 = vst [vmem:[%s1430 + $0x120] sm:$0xff] %v1503
                %v1505 = vld [vmem:[%s1429 + $0x128] sm:$0xff]
                %1506 = vst [vmem:[%s1430 + $0x128] sm:$0xff] %v1505
                %v1507 = vld [vmem:[%s1429 + $0x130] sm:$0xff]
                %1508 = vst [vmem:[%s1430 + $0x130] sm:$0xff] %v1507
                %v1509 = vld [vmem:[%s1429 + $0x138] sm:$0xff]
                %1510 = vst [vmem:[%s1430 + $0x138] sm:$0xff] %v1509
                %v1511 = vld [vmem:[%s1429 + $0x140] sm:$0xff]
                %1512 = vst [vmem:[%s1430 + $0x140] sm:$0xff] %v1511
                %v1513 = vld [vmem:[%s1429 + $0x148] sm:$0xff]
                %1514 = vst [vmem:[%s1430 + $0x148] sm:$0xff] %v1513
                %v1515 = vld [vmem:[%s1429 + $0x150] sm:$0xff]
                %1516 = vst [vmem:[%s1430 + $0x150] sm:$0xff] %v1515
                %v1517 = vld [vmem:[%s1429 + $0x158] sm:$0xff]
                %1518 = vst [vmem:[%s1430 + $0x158] sm:$0xff] %v1517
                %v1519 = vld [vmem:[%s1429 + $0x160] sm:$0xff]
                %1520 = vst [vmem:[%s1430 + $0x160] sm:$0xff] %v1519
                %v1521 = vld [vmem:[%s1429 + $0x168] sm:$0xff]
                %1522 = vst [vmem:[%s1430 + $0x168] sm:$0xff] %v1521
                %v1523 = vld [vmem:[%s1429 + $0x170] sm:$0xff]
                %1524 = vst [vmem:[%s1430 + $0x170] sm:$0xff] %v1523
                %v1525 = vld [vmem:[%s1429 + $0x178] sm:$0xff]
                %1526 = vst [vmem:[%s1430 + $0x178] sm:$0xff] %v1525
                %v1527 = vld [vmem:[%s1429 + $0x180] sm:$0xff]
                %1528 = vst [vmem:[%s1430 + $0x180] sm:$0xff] %v1527
                %v1529 = vld [vmem:[%s1429 + $0x188] sm:$0xff]
                %1530 = vst [vmem:[%s1430 + $0x188] sm:$0xff] %v1529
                %v1531 = vld [vmem:[%s1429 + $0x190] sm:$0xff]
                %1532 = vst [vmem:[%s1430 + $0x190] sm:$0xff] %v1531
                %v1533 = vld [vmem:[%s1429 + $0x198] sm:$0xff]
                %1534 = vst [vmem:[%s1430 + $0x198] sm:$0xff] %v1533
                %v1535 = vld [vmem:[%s1429 + $0x1a0] sm:$0xff]
                %1536 = vst [vmem:[%s1430 + $0x1a0] sm:$0xff] %v1535
                %v1537 = vld [vmem:[%s1429 + $0x1a8] sm:$0xff]
                %1538 = vst [vmem:[%s1430 + $0x1a8] sm:$0xff] %v1537
                %v1539 = vld [vmem:[%s1429 + $0x1b0] sm:$0xff]
                %1540 = vst [vmem:[%s1430 + $0x1b0] sm:$0xff] %v1539
                %v1541 = vld [vmem:[%s1429 + $0x1b8] sm:$0xff]
                %1542 = vst [vmem:[%s1430 + $0x1b8] sm:$0xff] %v1541
                %v1543 = vld [vmem:[%s1429 + $0x1c0] sm:$0xff]
                %1544 = vst [vmem:[%s1430 + $0x1c0] sm:$0xff] %v1543
                %v1545 = vld [vmem:[%s1429 + $0x1c8] sm:$0xff]
                %1546 = vst [vmem:[%s1430 + $0x1c8] sm:$0xff] %v1545
                %v1547 = vld [vmem:[%s1429 + $0x1d0] sm:$0xff]
                %1548 = vst [vmem:[%s1430 + $0x1d0] sm:$0xff] %v1547
                %v1549 = vld [vmem:[%s1429 + $0x1d8] sm:$0xff]
                %1550 = vst [vmem:[%s1430 + $0x1d8] sm:$0xff] %v1549
                %s1551 = sadd.s32 1, %s1428
                %p1552 = scmp.ge.s32.totalorder %s1551, %s1420
                %s1553 = scalar_select %p1552, 0, %s1551
                %s1554 = smul.u32 %s1553, 480
                %s1555 = smul.u32 %s1553, 480
                %s1556 = scalar_lea.vmem %s1400, %s1554 [#allocation2]
                %s1557 = scalar_lea.vmem %s1411, %s1555
              $region61: #{semantic_forward.1} parent=55 // loop_footer
                %s1425 = sadd.s32 %s1423, 1
              $region62: #{semantic_forward.1} parent=55 // loop_footer_branch
                %1422 = sbr.rel target = $region58
              $region63: #{semantic_forward.1} parent=55 // loop_exit
                _
              %s1558 = sdiv.u32.pop %s1407, 60
              %s1559 = srem.u32.pop %s1407, 60
              %s1560 = smul.u32 %s1558, 60
              %s1561 = smul.u32 8, %s1560
              %s1562 = scalar_lea.vmem %s1400, %s1561 [#allocation2]
              %s1563 = smul.u32 8, %s1560
              %s1564 = scalar_lea.vmem %s1411, %s1563
              // While loop
              $region64: #{semantic_forward.1} parent=55 // loop_pre_header
                _
              $region65: #{semantic_forward.1} parent=55 // loop_header
                %s1566 = sphi 0, %s1568
                %p1567 = scmp.ge.s32.totalorder %s1566, %s1559
                %s1571 = sphi 0, %s1578
                %s1572 = sphi %s1562, %s1581
                %s1573 = sphi %s1564, %s1582
              $region66: #{semantic_forward.1} parent=55 // loop_header_branch
                %1570 = sbr.rel (%p1567) target = $region70
              $region67: #{semantic_forward.1} parent=55 // loop_body
                %v1574 = vld [vmem:[%s1572] sm:$0xff]
                %1575 = vst [vmem:[%s1573] sm:$0xff] %v1574
                %s1576 = sadd.s32 1, %s1571
                %p1577 = scmp.ge.s32.totalorder %s1576, %s1559
                %s1578 = scalar_select %p1577, 0, %s1576
                %s1579 = smul.u32 %s1578, 8
                %s1580 = smul.u32 %s1578, 8
                %s1581 = scalar_lea.vmem %s1562, %s1579 [#allocation2]
                %s1582 = scalar_lea.vmem %s1564, %s1580
              $region68: #{semantic_forward.1} parent=55 // loop_footer
                %s1568 = sadd.s32 %s1566, 1
              $region69: #{semantic_forward.1} parent=55 // loop_footer_branch
                %1565 = sbr.rel target = $region65
              $region70: #{semantic_forward.1} parent=55 // loop_exit
                _
            $region56: #{semantic_forward.1} parent=47 // pred_fallthru
              _
          $region48: #{semantic_forward.1} parent=43 // pred_fallthru
            _
          %1750 = vnop
        $region44: #{semantic_forward.1} parent=39 // pred_fallthru
          _
      $region40: #{semantic_forward.1} parent=5 // pred_fallthru
        _
      %p1751 = scmp.le.s32.totalorder 2, %s11
      // Predicated region
      $region93: #{semantic_forward.1} parent=5 // pred_check
        %p1752 = pneg %p1751
      $region94: #{semantic_forward.1} parent=5 // pred_check_branch
        %1754 = sbr.rel (%p1752) target = $region96
      $region95: #{semantic_forward.1} parent=5 // pred_region
        %s1755 = ssub.s32 %s11, 2
        // Predicated region
        $region97: #{semantic_forward.1} parent=95 // pred_check
          %p1756 = pneg %p150
        $region98: #{semantic_forward.1} parent=95 // pred_check_branch
          %1758 = sbr.rel (%p1756) target = $region100
        $region99: #{semantic_forward.1} parent=95 // pred_region
          %s1759 = sand.u32 %s135, 1
          %s1760 = sand.u32 %s135, 1
          %s1761 = smul.addr %s1760, 480
          %s1762 = scalar_lea.vmem [#allocation2], %s1761
        $region100: #{semantic_forward.1} parent=95 // pred_fallthru
          _
      $region96: #{semantic_forward.1} parent=5 // pred_fallthru
        _
    $region6: #{semantic_forward.1} parent=1 // loop_footer
      %s15 = sadd.s32 1, %s11
    $region7: #{semantic_forward.1} parent=1 // loop_footer_branch
      %10 = sbr.rel target = $region3
    $region8: #{semantic_forward.1} parent=1 // loop_exit
      _

</llo_original>
